<compile_context>
chip_gen: v6e
topology: v6e:2x2x1
jax: 0.10.0
libtpu: 0.0.40
codegen_flags: <defaults>
</compile_context>

<pallas_src>
import functools

import jax
import jax.numpy as jnp
from jax.experimental import pallas as pl
from jax.experimental.pallas import tpu as pltpu


def _round_up(x, m):
    return (x + m - 1) // m * m


# ----------------------------------------------------------------------------
# Pallas kernel: block-sparse fused GCN conv   out = relu?( adj @ Y + b )
#   grid = (branch, row_tile, k)          k innermost (ragged, block-sparse)
#   adj tile : [1, T, T]  bf16   streamed, data-dependent column-block index
#   Y        : [1, Np, Op] bf16  VMEM-resident per branch, sliced with pl.ds
#   bias     : [1, 1,  Op] f32   resident
#   out      : [1, T,  Op] f32   accumulated in place across k
#   blk_cols : [2*n_rt, n_kt] i32 (scalar prefetch) column-block schedule
#   blk_cnt  : [2*n_rt]       i32 (scalar prefetch) valid entries per row tile
# ----------------------------------------------------------------------------
def _gcn_conv_kernel(cols_ref, cnt_ref, adj_ref, y_ref, b_ref, o_ref, *, relu, tk):
    b = pl.program_id(0)
    i = pl.program_id(1)
    k = pl.program_id(2)
    row = b * pl.num_programs(1) + i

    @pl.when(k == 0)
    def _():
        o_ref[...] = jnp.zeros_like(o_ref)

    # skip compute for padded (all-zero) adjacency blocks
    @pl.when(k < cnt_ref[row])
    def _():
        col = cols_ref[row, k]
        start = pl.multiple_of(col * tk, tk)
        y_blk = y_ref[0, pl.ds(start, tk), :]
        o_ref[0] = o_ref[0] + jnp.dot(adj_ref[0], y_blk,
                                      preferred_element_type=jnp.float32)

    @pl.when(k == pl.num_programs(2) - 1)
    def _():
        out = o_ref[0] + b_ref[0]
        if relu:
            out = jnp.maximum(out, 0.0)
        o_ref[0] = out


def gcn_conv_fused(adj_p, y_p, b_p, blk_cols, blk_cnt, *, relu, tile):
    """relu?( adj_p[br] @ y_p[br] + b_p[br] ) for both branches in one call."""
    nb, n_p, _ = adj_p.shape
    op = y_p.shape[-1]
    n_rt = n_p // tile            # row tiles   (tm == tk == tile)
    n_kt = n_p // tile            # static upper bound of the ragged k loop

    def adj_map(b, i, k, cols, cnt):          # data-dependent column block
        return (b, i, cols[b * n_rt + i, k])

    vmem_est = (3 * tile * tile * 2           # streamed adjacency tiles
                + 2 * n_p * op * 2            # resident Y (double-buffered)
                + 2 * tile * op * 4           # output tile
                + (2 << 20))                  # headroom
    vmem_limit = int(min(max(vmem_est, 32 * 2**20), 56 * 2**20))

    return pl.pallas_call(
        functools.partial(_gcn_conv_kernel, relu=relu, tk=tile),
        out_shape=jax.ShapeDtypeStruct((nb, n_p, op), jnp.float32),
        grid_spec=pltpu.PrefetchScalarGridSpec(
            num_scalar_prefetch=2,
            grid=(nb, n_rt, n_kt),
            in_specs=[
                pl.BlockSpec((1, tile, tile), adj_map),                       # adjacency
                pl.BlockSpec((1, n_p, op), lambda b, i, k, c, n: (b, 0, 0)),  # resident Y
                pl.BlockSpec((1, 1, op), lambda b, i, k, c, n: (b, 0, 0)),    # bias
            ],
            out_specs=pl.BlockSpec((1, tile, op), lambda b, i, k, c, n: (b, i, 0)),
        ),
        compiler_params=pltpu.CompilerParams(
            dimension_semantics=("parallel", "parallel", "arbitrary"),
            vmem_limit_bytes=vmem_limit),
    )(blk_cols, blk_cnt, adj_p, y_p, b_p)


# ----------------------------------------------------------------------------
# Adjacency build: scatter normalized weights straight into the padded bf16
# buffer (O(E)), plus the block-sparse column schedule for the kernel.
# ----------------------------------------------------------------------------
def build_adjacency_and_blocks(edge_index, N, n_p, tile):
    src = edge_index[0].astype(jnp.int32)
    dst = edge_index[1].astype(jnp.int32)
    idx = jnp.arange(N, dtype=jnp.int32)

    # D^{-1/2}(A+I)D^{-1/2};  TD: A[dst, src]=1, BU: edges reversed
    deg_td = jnp.ones((N,), jnp.float32).at[dst].add(1.0)
    deg_bu = jnp.ones((N,), jnp.float32).at[src].add(1.0)
    dinv_td = jax.lax.rsqrt(deg_td)
    dinv_bu = jax.lax.rsqrt(deg_bu)

    adj = jnp.zeros((2, n_p, n_p), jnp.bfloat16)
    adj = adj.at[0, dst, src].add((dinv_td[dst] * dinv_td[src]).astype(jnp.bfloat16))
    adj = adj.at[0, idx, idx].add((dinv_td * dinv_td).astype(jnp.bfloat16))
    adj = adj.at[1, src, dst].add((dinv_bu[src] * dinv_bu[dst]).astype(jnp.bfloat16))
    adj = adj.at[1, idx, idx].add((dinv_bu * dinv_bu).astype(jnp.bfloat16))

    # nonzero (row_tile, col_tile) blocks, O(E) + O(N)
    n_t = n_p // tile
    nz = jnp.zeros((2, n_t, n_t), jnp.int32)
    nz = nz.at[0, dst // tile, src // tile].set(1)
    nz = nz.at[1, src // tile, dst // tile].set(1)
    diag = idx // tile
    nz = nz.at[0, diag, diag].set(1)
    nz = nz.at[1, diag, diag].set(1)

    nzb = nz > 0
    blk_cnt = nzb.sum(axis=-1).astype(jnp.int32).reshape(2 * n_t)            # [2*n_t]
    keys = jnp.where(nzb, jnp.arange(n_t, dtype=jnp.int32)[None, None, :], n_t)
    cols_sorted = jnp.sort(keys, axis=-1).reshape(2 * n_t, n_t)              # nz cols first
    last = jnp.take_along_axis(cols_sorted, jnp.maximum(blk_cnt - 1, 0)[:, None], axis=-1)
    last = jnp.where(blk_cnt[:, None] > 0, last, 0)
    # pad the ragged tail by repeating the last valid block -> the unchanged
    # block index lets Pallas skip the DMA for the padded steps.
    blk_cols = jnp.where(cols_sorted >= n_t, last, cols_sorted).astype(jnp.int32)
    return adj, blk_cols, blk_cnt


# ----------------------------------------------------------------------------
# Parameter init
# ----------------------------------------------------------------------------
def init_params(key, in_feats, hid, out_feats, num_classes):
    def lin(k, fan_in, fan_out):
        k1, k2 = jax.random.split(k)
        w = jax.random.normal(k1, (fan_in, fan_out), jnp.float32) * 0.1
        b = jax.random.normal(k2, (fan_out,), jnp.float32) * 0.01
        return w, b

    keys = jax.random.split(key, 15)
    return {
        "td_conv1": lin(keys[0], in_feats, hid),
        "td_conv2": lin(keys[1], hid + in_feats, out_feats),
        "bu_conv1": lin(keys[2], in_feats, hid),
        "bu_conv2": lin(keys[3], hid + in_feats, out_feats),
        "fc":       lin(keys[4], (out_feats + hid) * 2, num_classes),
        "W_u0":     lin(keys[5], 1, hid),
        "W_s0":     lin(keys[6], 1, hid),
        "W_d0":     lin(keys[7], 1, hid),
        "W_u":      lin(keys[8], hid, hid),
        "W_s":      lin(keys[9], hid, hid),
        "W_d":      lin(keys[10], hid, hid),
        "W_x":      lin(keys[11], 3 * hid, out_feats + hid),
        "l_u":      lin(keys[12], hid, 1),
        "l_s":      lin(keys[13], hid, 1),
        "l_d":      lin(keys[14], hid, 1),
        "raw_alpha": jnp.array(0.3, jnp.float32),   # args.init_alpha (non-'random')
        "raw_beta":  jnp.array(0.2, jnp.float32),   # args.init_beta
    }


# ----------------------------------------------------------------------------
# Full BiGCN forward
# ----------------------------------------------------------------------------
def bigcn_forward(params, x, edge_index, batch, user_state, n_hop,
                  num_graphs, max_hop):
    N, in_feats = x.shape
    B = num_graphs
    hid = params["W_u"][0].shape[0]
    out_feats = params["td_conv2"][0].shape[1]

    # larger tiles amortize the ~0.35us per-grid-step overhead; small graphs
    # keep 128/256 so padding stays modest.  tm == tk keeps the sparse map simple.
    tile = 512 if N > 512 else (256 if N > 128 else 128)
    n_p = _round_up(N, tile)

    adj, blk_cols, blk_cnt = build_adjacency_and_blocks(edge_index, N, n_p, tile)

    xf = x.astype(jnp.float32)

    # per-graph bookkeeping (first node of each graph is the root, as in the module)
    root_idx = jnp.argmax(batch[None, :] == jnp.arange(B)[:, None], axis=1)
    node_root = root_idx[batch]                               # root node id per node
    root1_rows = xf[node_root]                                # root_extend of x1 (TD & BU)
    graph_cnt = jnp.zeros((B,), jnp.float32).at[batch].add(1.0)
    graph_inv = 1.0 / jnp.maximum(graph_cnt, 1.0)

    # ---- conv1 (branch 0 = TD, 1 = BU): re-associated adj @ (X @ W1) + b1 ----
    op1 = _round_up(hid, 128)
    y1 = jnp.stack([xf @ params["td_conv1"][0], xf @ params["bu_conv1"][0]])   # [2,N,hid]
    y1_p = jnp.zeros((2, n_p, op1), jnp.bfloat16).at[:, :N, :hid].set(
        y1.astype(jnp.bfloat16))
    b1_p = (jnp.zeros((2, 1, op1), jnp.float32)
            .at[0, 0, :hid].set(params["td_conv1"][1])
            .at[1, 0, :hid].set(params["bu_conv1"][1]))
    h1 = gcn_conv_fused(adj, y1_p, b1_p, blk_cols, blk_cnt, relu=False, tile=tile)
    h1v = h1[:, :N, :hid]                                     # conv1 output per branch

    root2 = h1v[:, node_root, :]                              # root_extend of x2, [2,N,hid]

    # relu(cat(conv1_out, root_extend(x1))) == cat(relu(.), relu(.))
    # TODO(synk): F.dropout(training=True) omitted -- eval-mode identity used.
    cat2 = jnp.concatenate(
        [jnp.maximum(h1v, 0.0),
         jnp.broadcast_to(jnp.maximum(root1_rows, 0.0)[None], (2, N, in_feats))],
        axis=-1)                                              # [2, N, hid+in]

    # ---- conv2: relu( adj @ (cat2 @ W2) + b2 ) ----
    op2 = _round_up(out_feats, 128)
    w2 = jnp.stack([params["td_conv2"][0], params["bu_conv2"][0]])            # [2,hid+in,out]
    y2 = jnp.einsum("bnf,bfo->bno", cat2, w2)                                 # [2,N,out]
    y2_p = jnp.zeros((2, n_p, op2), jnp.bfloat16).at[:, :N, :out_feats].set(
        y2.astype(jnp.bfloat16))
    b2_p = (jnp.zeros((2, 1, op2), jnp.float32)
            .at[0, 0, :out_feats].set(params["td_conv2"][1])
            .at[1, 0, :out_feats].set(params["bu_conv2"][1]))
    h2 = gcn_conv_fused(adj, y2_p, b2_p, blk_cols, blk_cnt, relu=True, tile=tile)

    # cat(conv2_out, root_extend(x2)) + scatter_mean over graphs (tiny, XLA)
    cat_out = jnp.concatenate([h2[:, :N, :out_feats], root2], axis=-1)        # [2,N,out+hid]
    td_pool = (jnp.zeros((B, out_feats + hid), jnp.float32)
               .at[batch].add(cat_out[0])) * graph_inv[:, None]
    bu_pool = (jnp.zeros((B, out_feats + hid), jnp.float32)
               .at[batch].add(cat_out[1])) * graph_inv[:, None]

    # ---- physics hop recurrence (B=2 -> plain XLA) ----
    alpha = jax.nn.sigmoid(params["raw_alpha"])
    beta = jax.nn.sigmoid(params["raw_beta"])
    lin = lambda t, p: t @ p[0] + p[1]
    u0 = jnp.sum(user_state, axis=(1, 2))[:, None]
    s0 = jnp.zeros((B, 1), jnp.float32)
    d0 = jnp.zeros((B, 1), jnp.float32)
    U_ = lin(u0, params["W_u0"])
    S_ = lin(s0, params["W_s0"])
    D_ = lin(d0, params["W_d0"])
    Ul, Sl, Dl = [], [], []
    for _ in range(max_hop):
        U_ = U_ - alpha * U_ - beta * U_
        U_ = lin(U_, params["W_u"])
        S_ = S_ + alpha * U_
        S_ = lin(S_, params["W_s"])
        D_ = D_ + beta * U_
        D_ = lin(D_, params["W_d"])
        Ul.append(U_); Sl.append(S_); Dl.append(D_)
    U = jnp.stack(Ul, axis=1)                                 # [B, max_hop, hid]
    S = jnp.stack(Sl, axis=1)
    D = jnp.stack(Dl, axis=1)

    hop_ind = (n_hop - 1).astype(jnp.int32)
    bidx = jnp.arange(B)
    xg = jnp.concatenate([U[bidx, hop_ind], S[bidx, hop_ind], D[bidx, hop_ind]], axis=1)
    xg = lin(xg, params["W_x"])                               # [B, out+hid]

    U_out = U @ params["l_u"][0] + params["l_u"][1]           # [B, max_hop, 1]
    S_out = S @ params["l_s"][0] + params["l_s"][1]
    D_out = D @ params["l_d"][0] + params["l_d"][1]

    TD_x = td_pool + xg
    BU_x = bu_pool + xg
    h = jnp.concatenate([BU_x, TD_x], axis=1)                 # [B, 2*(out+hid)]
    logits = h @ params["fc"][0] + params["fc"][1]
    return jax.nn.log_softmax(logits, axis=-1), U_out, S_out, D_out


# ----------------------------------------------------------------------------
if __name__ == "__main__":
    in_feats, hid_feats, out_feats, num_classes = 16, 32, 32, 4
    max_hop = 3
    B = 2
    nodes_per_graph = 5
    N = B * nodes_per_graph

    key = jax.random.PRNGKey(0)
    kp, kx, ku = jax.random.split(key, 3)
    params = init_params(kp, in_feats, hid_feats, out_feats, num_classes)

    x = jax.random.normal(kx, (N, in_feats), jnp.float32)
    # two small trees: node 0 is the root of each graph
    e_src, e_dst = [], []
    for g in range(B):
        o = g * nodes_per_graph
        for (s, d) in [(0, 1), (0, 2), (1, 3), (2, 4)]:
            e_src.append(o + s)
            e_dst.append(o + d)
    edge_index = jnp.array([e_src, e_dst], dtype=jnp.int32)
    batch = jnp.repeat(jnp.arange(B, dtype=jnp.int32), nodes_per_graph)
    user_state = jax.random.uniform(ku, (B, 3, 4), jnp.float32)
    n_hop = jnp.array([1, 3], dtype=jnp.int32)

    fwd = jax.jit(functools.partial(bigcn_forward, num_graphs=B, max_hop=max_hop))
    logp, U, S, D = fwd(params, x, edge_index, batch, user_state, n_hop)
    jax.block_until_ready((logp, U, S, D))

    assert logp.shape == (B, num_classes)
    assert U.shape == (B, max_hop, 1)
    assert S.shape == (B, max_hop, 1)
    assert D.shape == (B, max_hop, 1)
    assert bool(jnp.all(jnp.isfinite(logp)))
    print("KERNEL_OK")
</pallas_src>

<mosaic_0001>
module attributes {stable_mosaic.version = 11 : i64} {
  func.func private @main(%arg0: i32) attributes {dimension_semantics = [#tpu.dimension_semantics<core_parallel>], iteration_bounds = array<i64: 2>, tpu.core_type = #tpu.core_type<sc_scalar_subcore>, window_params = []} {
    return
  }
}

module attributes {stable_mosaic.version = 11 : i64} {
  func.func private @main(%arg0: i32) attributes {dimension_semantics = [#tpu.dimension_semantics<core_parallel>], iteration_bounds = array<i64: 2>, tpu.core_type = #tpu.core_type<sc_scalar_subcore>, window_params = []} {
    return
  }
}

module attributes {stable_mosaic.version = 11 : i64} {
  func.func @_gcn_conv_kernel(%arg0: i32, %arg1: i32, %arg2: i32, %arg3: memref<2x1xi32, #tpu.memory_space<smem>>, %arg4: memref<2xi32, #tpu.memory_space<smem>>, %arg5: memref<1x128x128xbf16, #tpu.memory_space<vmem>>, %arg6: memref<1x128x128xbf16, #tpu.memory_space<vmem>>, %arg7: memref<1x1x128xf32, #tpu.memory_space<vmem>>, %arg8: memref<1x128x128xf32, #tpu.memory_space<vmem>>) attributes {dimension_semantics = [#tpu.dimension_semantics<parallel>, #tpu.dimension_semantics<parallel>, #tpu.dimension_semantics<arbitrary>], iteration_bounds = array<i64: 2, 1, 1>, scalar_prefetch = 2 : i64, scratch_operands = 0 : i64, tpu.core_type = #tpu.core_type<tc>, window_params = [{transform_indices = @transform_0, window_bounds = array<i64: 1, 128, 128>}, {transform_indices = @transform_1, window_bounds = array<i64: 1, 128, 128>}, {transform_indices = @transform_2, window_bounds = array<i64: 1, 1, 128>}, {transform_indices = @transform_3, window_bounds = array<i64: 1, 128, 128>}]} {
    %c1_i32 = arith.constant 1 : i32
    %0 = arith.muli %arg0, %c1_i32 : i32
    %1 = arith.addi %0, %arg1 : i32
    %c0_i32 = arith.constant 0 : i32
    %2 = arith.cmpi eq, %arg2, %c0_i32 : i32
    %3 = arith.extui %2 : i1 to i32
    %c0_i32_0 = arith.constant 0 : i32
    %4 = arith.cmpi ne, %3, %c0_i32_0 : i32
    scf.if %4 {
      %cst = arith.constant 0.000000e+00 : f32
      %13 = vector.broadcast %cst : f32 to vector<1x128x128xf32>
      %c0 = arith.constant 0 : index
      %c0_4 = arith.constant 0 : index
      %c0_5 = arith.constant 0 : index
      %14 = vector.load %arg8[%c0, %c0_4, %c0_5] : memref<1x128x128xf32, #tpu.memory_space<vmem>>, vector<1x128x128xf32>
      tpu.vector_store %arg8[%c0, %c0_4, %c0_5], %13 {strides = array<i32>} : memref<1x128x128xf32, #tpu.memory_space<vmem>>, vector<1x128x128xf32>,
    } else {
    }
    %5 = arith.index_cast %1 : i32 to index
    %6 = memref.load %arg4[%5] : memref<2xi32, #tpu.memory_space<smem>>
    %7 = arith.cmpi slt, %arg2, %6 : i32
    %8 = arith.extui %7 : i1 to i32
    %c0_i32_1 = arith.constant 0 : i32
    %9 = arith.cmpi ne, %8, %c0_i32_1 : i32
    scf.if %9 {
      %13 = arith.index_cast %1 : i32 to index
      %14 = arith.index_cast %arg2 : i32 to index
      %15 = memref.load %arg3[%13, %14] : memref<2x1xi32, #tpu.memory_space<smem>>
      %c128_i32 = arith.constant 128 : i32
      %16 = arith.muli %15, %c128_i32 : i32
      %17 = tpu.assume_multiple %16, 128 : i32
      %c0 = arith.constant 0 : index
      %18 = arith.index_cast %17 : i32 to index
      %c0_4 = arith.constant 0 : index
      %19 = vector.load %arg6[%c0, %18, %c0_4] : memref<1x128x128xbf16, #tpu.memory_space<vmem>>, vector<1x128x128xbf16>
      %20 = vector.shape_cast %19 : vector<1x128x128xbf16> to vector<128x128xbf16>
      %c0_5 = arith.constant 0 : index
      %c0_6 = arith.constant 0 : index
      %c0_7 = arith.constant 0 : index
      %21 = vector.load %arg8[%c0_5, %c0_6, %c0_7] : memref<1x128x128xf32, #tpu.memory_space<vmem>>, vector<1x128x128xf32>
      %22 = vector.shape_cast %21 : vector<1x128x128xf32> to vector<128x128xf32>
      %c0_8 = arith.constant 0 : index
      %c0_9 = arith.constant 0 : index
      %c0_10 = arith.constant 0 : index
      %23 = vector.load %arg5[%c0_8, %c0_9, %c0_10] : memref<1x128x128xbf16, #tpu.memory_space<vmem>>, vector<1x128x128xbf16>
      %24 = vector.shape_cast %23 : vector<1x128x128xbf16> to vector<128x128xbf16>
      %cst = arith.constant dense<0.000000e+00> : vector<128x128xf32>
      %25 = tpu.matmul %24, %20, %cst {dimension_numbers = #tpu.dot_dimension_numbers<[1], [0], [0], [1], [0, 0, 1, 1], [], []>} : vector<128x128xbf16>, vector<128x128xbf16>, vector<128x128xf32> -> vector<128x128xf32>
      %26 = arith.addf %22, %25 : vector<128x128xf32>
      %c0_11 = arith.constant 0 : index
      %c0_12 = arith.constant 0 : index
      %c0_13 = arith.constant 0 : index
      %27 = vector.load %arg8[%c0_11, %c0_12, %c0_13] : memref<1x128x128xf32, #tpu.memory_space<vmem>>, vector<1x128x128xf32>
      %28 = vector.shape_cast %27 : vector<1x128x128xf32> to vector<128x128xf32>
      %29 = vector.shape_cast %26 : vector<128x128xf32> to vector<1x128x128xf32>
      tpu.vector_store %arg8[%c0_11, %c0_12, %c0_13], %29 {strides = array<i32>} : memref<1x128x128xf32, #tpu.memory_space<vmem>>, vector<1x128x128xf32>,
    } else {
    }
    %c0_i32_2 = arith.constant 0 : i32
    %10 = arith.cmpi eq, %arg2, %c0_i32_2 : i32
    %11 = arith.extui %10 : i1 to i32
    %c0_i32_3 = arith.constant 0 : i32
    %12 = arith.cmpi ne, %11, %c0_i32_3 : i32
    scf.if %12 {
      %c0 = arith.constant 0 : index
      %c0_4 = arith.constant 0 : index
      %c0_5 = arith.constant 0 : index
      %13 = vector.load %arg8[%c0, %c0_4, %c0_5] : memref<1x128x128xf32, #tpu.memory_space<vmem>>, vector<1x128x128xf32>
      %14 = vector.shape_cast %13 : vector<1x128x128xf32> to vector<128x128xf32>
      %c0_6 = arith.constant 0 : index
      %c0_7 = arith.constant 0 : index
      %c0_8 = arith.constant 0 : index
      %15 = vector.load %arg7[%c0_6, %c0_7, %c0_8] : memref<1x1x128xf32, #tpu.memory_space<vmem>>, vector<1x1x128xf32>
      %16 = vector.shape_cast %15 : vector<1x1x128xf32> to vector<1x128xf32>
      %17 = vector.broadcast %16 : vector<1x128xf32> to vector<128x128xf32>
      %18 = arith.addf %14, %17 : vector<128x128xf32>
      %c0_9 = arith.constant 0 : index
      %c0_10 = arith.constant 0 : index
      %c0_11 = arith.constant 0 : index
      %19 = vector.load %arg8[%c0_9, %c0_10, %c0_11] : memref<1x128x128xf32, #tpu.memory_space<vmem>>, vector<1x128x128xf32>
      %20 = vector.shape_cast %19 : vector<1x128x128xf32> to vector<128x128xf32>
      %21 = vector.shape_cast %18 : vector<128x128xf32> to vector<1x128x128xf32>
      tpu.vector_store %arg8[%c0_9, %c0_10, %c0_11], %21 {strides = array<i32>} : memref<1x128x128xf32, #tpu.memory_space<vmem>>, vector<1x128x128xf32>,
    } else {
    }
    return
  }
  func.func @transform_0(%arg0: i32, %arg1: i32, %arg2: i32, %arg3: memref<2x1xi32, #tpu.memory_space<smem>>, %arg4: memref<2xi32, #tpu.memory_space<smem>>) -> (i32, i32, i32) {
    %c1_i32 = arith.constant 1 : i32
    %0 = arith.muli %arg0, %c1_i32 : i32
    %1 = arith.addi %0, %arg1 : i32
    %2 = arith.index_cast %1 : i32 to index
    %3 = arith.index_cast %arg2 : i32 to index
    %4 = memref.load %arg3[%2, %3] : memref<2x1xi32, #tpu.memory_space<smem>>
    %c0_i32 = arith.constant 0 : i32
    return %arg0, %arg1, %4 : i32, i32, i32
  }
  func.func @transform_1(%arg0: i32, %arg1: i32, %arg2: i32, %arg3: memref<2x1xi32, #tpu.memory_space<smem>>, %arg4: memref<2xi32, #tpu.memory_space<smem>>) -> (i32, i32, i32) {
    %c0_i32 = arith.constant 0 : i32
    %c0_i32_0 = arith.constant 0 : i32
    %c0_i32_1 = arith.constant 0 : i32
    return %arg0, %c0_i32, %c0_i32_0 : i32, i32, i32
  }
  func.func @transform_2(%arg0: i32, %arg1: i32, %arg2: i32, %arg3: memref<2x1xi32, #tpu.memory_space<smem>>, %arg4: memref<2xi32, #tpu.memory_space<smem>>) -> (i32, i32, i32) {
    %c0_i32 = arith.constant 0 : i32
    %c0_i32_0 = arith.constant 0 : i32
    %c0_i32_1 = arith.constant 0 : i32
    return %arg0, %c0_i32, %c0_i32_0 : i32, i32, i32
  }
  func.func @transform_3(%arg0: i32, %arg1: i32, %arg2: i32, %arg3: memref<2x1xi32, #tpu.memory_space<smem>>, %arg4: memref<2xi32, #tpu.memory_space<smem>>) -> (i32, i32, i32) {
    %c0_i32 = arith.constant 0 : i32
    %c0_i32_0 = arith.constant 0 : i32
    return %arg0, %arg1, %c0_i32 : i32, i32, i32
  }
}

module attributes {stable_mosaic.version = 11 : i64} {
  func.func @_gcn_conv_kernel(%arg0: i32, %arg1: i32, %arg2: i32, %arg3: memref<2x1xi32, #tpu.memory_space<smem>>, %arg4: memref<2xi32, #tpu.memory_space<smem>>, %arg5: memref<1x128x128xbf16, #tpu.memory_space<vmem>>, %arg6: memref<1x128x128xbf16, #tpu.memory_space<vmem>>, %arg7: memref<1x1x128xf32, #tpu.memory_space<vmem>>, %arg8: memref<1x128x128xf32, #tpu.memory_space<vmem>>) attributes {dimension_semantics = [#tpu.dimension_semantics<parallel>, #tpu.dimension_semantics<parallel>, #tpu.dimension_semantics<arbitrary>], iteration_bounds = array<i64: 2, 1, 1>, scalar_prefetch = 2 : i64, scratch_operands = 0 : i64, tpu.core_type = #tpu.core_type<tc>, window_params = [{transform_indices = @transform_0, window_bounds = array<i64: 1, 128, 128>}, {transform_indices = @transform_1, window_bounds = array<i64: 1, 128, 128>}, {transform_indices = @transform_2, window_bounds = array<i64: 1, 1, 128>}, {transform_indices = @transform_3, window_bounds = array<i64: 1, 128, 128>}]} {
    %c1_i32 = arith.constant 1 : i32
    %0 = arith.muli %arg0, %c1_i32 : i32
    %1 = arith.addi %0, %arg1 : i32
    %c0_i32 = arith.constant 0 : i32
    %2 = arith.cmpi eq, %arg2, %c0_i32 : i32
    %3 = arith.extui %2 : i1 to i32
    %c0_i32_0 = arith.constant 0 : i32
    %4 = arith.cmpi ne, %3, %c0_i32_0 : i32
    scf.if %4 {
      %cst = arith.constant 0.000000e+00 : f32
      %13 = vector.broadcast %cst : f32 to vector<1x128x128xf32>
      %c0 = arith.constant 0 : index
      %c0_4 = arith.constant 0 : index
      %c0_5 = arith.constant 0 : index
      %14 = vector.load %arg8[%c0, %c0_4, %c0_5] : memref<1x128x128xf32, #tpu.memory_space<vmem>>, vector<1x128x128xf32>
      tpu.vector_store %arg8[%c0, %c0_4, %c0_5], %13 {strides = array<i32>} : memref<1x128x128xf32, #tpu.memory_space<vmem>>, vector<1x128x128xf32>,
    } else {
    }
    %5 = arith.index_cast %1 : i32 to index
    %6 = memref.load %arg4[%5] : memref<2xi32, #tpu.memory_space<smem>>
    %7 = arith.cmpi slt, %arg2, %6 : i32
    %8 = arith.extui %7 : i1 to i32
    %c0_i32_1 = arith.constant 0 : i32
    %9 = arith.cmpi ne, %8, %c0_i32_1 : i32
    scf.if %9 {
      %13 = arith.index_cast %1 : i32 to index
      %14 = arith.index_cast %arg2 : i32 to index
      %15 = memref.load %arg3[%13, %14] : memref<2x1xi32, #tpu.memory_space<smem>>
      %c128_i32 = arith.constant 128 : i32
      %16 = arith.muli %15, %c128_i32 : i32
      %17 = tpu.assume_multiple %16, 128 : i32
      %c0 = arith.constant 0 : index
      %18 = arith.index_cast %17 : i32 to index
      %c0_4 = arith.constant 0 : index
      %19 = vector.load %arg6[%c0, %18, %c0_4] : memref<1x128x128xbf16, #tpu.memory_space<vmem>>, vector<1x128x128xbf16>
      %20 = vector.shape_cast %19 : vector<1x128x128xbf16> to vector<128x128xbf16>
      %c0_5 = arith.constant 0 : index
      %c0_6 = arith.constant 0 : index
      %c0_7 = arith.constant 0 : index
      %21 = vector.load %arg8[%c0_5, %c0_6, %c0_7] : memref<1x128x128xf32, #tpu.memory_space<vmem>>, vector<1x128x128xf32>
      %22 = vector.shape_cast %21 : vector<1x128x128xf32> to vector<128x128xf32>
      %c0_8 = arith.constant 0 : index
      %c0_9 = arith.constant 0 : index
      %c0_10 = arith.constant 0 : index
      %23 = vector.load %arg5[%c0_8, %c0_9, %c0_10] : memref<1x128x128xbf16, #tpu.memory_space<vmem>>, vector<1x128x128xbf16>
      %24 = vector.shape_cast %23 : vector<1x128x128xbf16> to vector<128x128xbf16>
      %cst = arith.constant dense<0.000000e+00> : vector<128x128xf32>
      %25 = tpu.matmul %24, %20, %cst {dimension_numbers = #tpu.dot_dimension_numbers<[1], [0], [0], [1], [0, 0, 1, 1], [], []>} : vector<128x128xbf16>, vector<128x128xbf16>, vector<128x128xf32> -> vector<128x128xf32>
      %26 = arith.addf %22, %25 : vector<128x128xf32>
      %c0_11 = arith.constant 0 : index
      %c0_12 = arith.constant 0 : index
      %c0_13 = arith.constant 0 : index
      %27 = vector.load %arg8[%c0_11, %c0_12, %c0_13] : memref<1x128x128xf32, #tpu.memory_space<vmem>>, vector<1x128x128xf32>
      %28 = vector.shape_cast %27 : vector<1x128x128xf32> to vector<128x128xf32>
      %29 = vector.shape_cast %26 : vector<128x128xf32> to vector<1x128x128xf32>
      tpu.vector_store %arg8[%c0_11, %c0_12, %c0_13], %29 {strides = array<i32>} : memref<1x128x128xf32, #tpu.memory_space<vmem>>, vector<1x128x128xf32>,
    } else {
    }
    %c0_i32_2 = arith.constant 0 : i32
    %10 = arith.cmpi eq, %arg2, %c0_i32_2 : i32
    %11 = arith.extui %10 : i1 to i32
    %c0_i32_3 = arith.constant 0 : i32
    %12 = arith.cmpi ne, %11, %c0_i32_3 : i32
    scf.if %12 {
      %c0 = arith.constant 0 : index
      %c0_4 = arith.constant 0 : index
      %c0_5 = arith.constant 0 : index
      %13 = vector.load %arg8[%c0, %c0_4, %c0_5] : memref<1x128x128xf32, #tpu.memory_space<vmem>>, vector<1x128x128xf32>
      %14 = vector.shape_cast %13 : vector<1x128x128xf32> to vector<128x128xf32>
      %c0_6 = arith.constant 0 : index
      %c0_7 = arith.constant 0 : index
      %c0_8 = arith.constant 0 : index
      %15 = vector.load %arg7[%c0_6, %c0_7, %c0_8] : memref<1x1x128xf32, #tpu.memory_space<vmem>>, vector<1x1x128xf32>
      %16 = vector.shape_cast %15 : vector<1x1x128xf32> to vector<1x128xf32>
      %17 = vector.broadcast %16 : vector<1x128xf32> to vector<128x128xf32>
      %18 = arith.addf %14, %17 : vector<128x128xf32>
      %cst = arith.constant 0.000000e+00 : f32
      %19 = vector.broadcast %cst : f32 to vector<128x128xf32>
      %20 = arith.maximumf %18, %19 : vector<128x128xf32>
      %c0_9 = arith.constant 0 : index
      %c0_10 = arith.constant 0 : index
      %c0_11 = arith.constant 0 : index
      %21 = vector.load %arg8[%c0_9, %c0_10, %c0_11] : memref<1x128x128xf32, #tpu.memory_space<vmem>>, vector<1x128x128xf32>
      %22 = vector.shape_cast %21 : vector<1x128x128xf32> to vector<128x128xf32>
      %23 = vector.shape_cast %20 : vector<128x128xf32> to vector<1x128x128xf32>
      tpu.vector_store %arg8[%c0_9, %c0_10, %c0_11], %23 {strides = array<i32>} : memref<1x128x128xf32, #tpu.memory_space<vmem>>, vector<1x128x128xf32>,
    } else {
    }
    return
  }
  func.func @transform_0(%arg0: i32, %arg1: i32, %arg2: i32, %arg3: memref<2x1xi32, #tpu.memory_space<smem>>, %arg4: memref<2xi32, #tpu.memory_space<smem>>) -> (i32, i32, i32) {
    %c1_i32 = arith.constant 1 : i32
    %0 = arith.muli %arg0, %c1_i32 : i32
    %1 = arith.addi %0, %arg1 : i32
    %2 = arith.index_cast %1 : i32 to index
    %3 = arith.index_cast %arg2 : i32 to index
    %4 = memref.load %arg3[%2, %3] : memref<2x1xi32, #tpu.memory_space<smem>>
    %c0_i32 = arith.constant 0 : i32
    return %arg0, %arg1, %4 : i32, i32, i32
  }
  func.func @transform_1(%arg0: i32, %arg1: i32, %arg2: i32, %arg3: memref<2x1xi32, #tpu.memory_space<smem>>, %arg4: memref<2xi32, #tpu.memory_space<smem>>) -> (i32, i32, i32) {
    %c0_i32 = arith.constant 0 : i32
    %c0_i32_0 = arith.constant 0 : i32
    %c0_i32_1 = arith.constant 0 : i32
    return %arg0, %c0_i32, %c0_i32_0 : i32, i32, i32
  }
  func.func @transform_2(%arg0: i32, %arg1: i32, %arg2: i32, %arg3: memref<2x1xi32, #tpu.memory_space<smem>>, %arg4: memref<2xi32, #tpu.memory_space<smem>>) -> (i32, i32, i32) {
    %c0_i32 = arith.constant 0 : i32
    %c0_i32_0 = arith.constant 0 : i32
    %c0_i32_1 = arith.constant 0 : i32
    return %arg0, %c0_i32, %c0_i32_0 : i32, i32, i32
  }
  func.func @transform_3(%arg0: i32, %arg1: i32, %arg2: i32, %arg3: memref<2x1xi32, #tpu.memory_space<smem>>, %arg4: memref<2xi32, #tpu.memory_space<smem>>) -> (i32, i32, i32) {
    %c0_i32 = arith.constant 0 : i32
    %c0_i32_0 = arith.constant 0 : i32
    return %arg0, %arg1, %c0_i32 : i32, i32, i32
  }
}

</mosaic_0001>

<llo_original>
// kernel: bigcn_forward.2
$region0: #{bigcn_forward.2}
  #allocation0 [shape = 'u32[]', space=smem, size = 0x4, offset = 0x4, fixed_abs, tag = 'smem constant byte address 0x4 - core index']
  #allocation1 [shape = 'u32[144,128]{1,0:T(1,128)}', space=vmem, size = 0x12000, scoped, tag = 'internal scratch']
  #allocation2 [shape = 's32[1]{0}', space=sflag, size = 0x4, scoped, tag = 'scoped memory for bigcn_forward.2']
  #allocation3 [shape = 'u8[1024]{0}', space=smem, size = 0x400, scoped, tag = 'prefetched SMEM operand 0']
  #allocation4 [shape = 'u8[512]{0}', space=smem, size = 0x200, scoped, tag = 'prefetched SMEM operand 1']
  %s0 = inlined_call_operand.vmem [shape: s32[2,1], index: 0, kind: input, shape index: {}]
  %s1 = inlined_call_operand.vmem [shape: s32[2], index: 1, kind: input, shape index: {}]
  %s2 = inlined_call_operand.vmem [shape: bf16[2,128,128], index: 2, kind: input, shape index: {}]
  %s3 = inlined_call_operand.vmem [shape: bf16[2,128,128], index: 3, kind: input, shape index: {}]
  %s4 = inlined_call_operand.vmem [shape: f32[2,1,128], index: 4, kind: input, shape index: {}]
  %s5 = inlined_call_operand.vmem [shape: f32[2,128,128], index: 5, kind: output, shape index: {}]
  %s6 = sld [smem:[#allocation0]]
  $region57: #{bigcn_forward.2} parent=0
    _
  %s8 = ssub.s32 1, %s6
  %s9 = scalar_select 0, %s8, %s6
  %s10 = sshll.u32 %s0, 4
  %s11 = int_to_ptr.vmem [resolvable:$true] %s10
  %13 = dma.vmem_to_smem %s11, 32, [#allocation3], [#allocation2]
  %s14 = sshll.u32 %s1, 4
  %s15 = int_to_ptr.vmem [resolvable:$true] %s14
  %17 = dma.vmem_to_smem %s15, 16, [#allocation4], [#allocation2]
  %18 = dma.done [#allocation2], 48
  %19 = sfence
  loop: start=0, step=1, limit=4
  $region2: #{bigcn_forward.2} parent=0 // loop_pre_header
    _
  $region3: #{bigcn_forward.2} parent=0 // loop_header
    %s21 = sphi 0, %s25
    %p22 = scmp.ge.s32.totalorder %s21, 4
    %s28 = sphi 0, %s47
    %s29 = sphi 0, %s43
    %s30 = sphi 0, %s39
    %s31 = sphi 0, %s28
    %s32 = sphi 0, %s29
    %s33 = sphi 0, %s30
    %s34 = sphi 0, %s31
    %s35 = sphi 0, %s32
    %s36 = sphi 0, %s33
    %s72 = sphi 0, %s74
    %s75 = sphi 0, %s72
    %s76 = sphi 0, %s75
    %s92 = sphi 0, %s76
    %s98 = sphi 0, %s100
    %s101 = sphi 0, %s98
    %s102 = sphi 0, %s101
    %s118 = sphi 0, %s102
    %s124 = sphi 0, %s126
    %s127 = sphi 0, %s124
    %s128 = sphi 0, %s127
    %s144 = sphi 0, %s128
    %s152 = sphi 0, %s154
    %s155 = sphi 0, %s152
    %s156 = sphi 0, %s155
    %s172 = sphi 0, %s156
  $region4: #{bigcn_forward.2} parent=0 // loop_header_branch
    %24 = sbr.rel (%p22) target = $region8
  $region5: #{bigcn_forward.2} parent=0 // loop_body
    %s26 = ssub.s32 %s21, 1
    %s27 = ssub.s32 %s21, 2
    %s37 = sadd.s32 1, %s30
    %p38 = scmp.ge.s32.totalorder %s37, 1
    %s39 = scalar_select %p38, 0, %s37
    %s40 = sadd.s32 1, %s29
    %s41 = scalar_select %p38, %s40, %s29
    %p42 = scmp.ge.s32.totalorder %s41, 1
    %s43 = scalar_select %p42, 0, %s41
    %s44 = sadd.s32 1, %s28
    %s45 = scalar_select %p42, %s44, %s28
    %p46 = scmp.ge.s32.totalorder %s45, 2
    %s47 = scalar_select %p46, 0, %s45
    %s48 = sadd.s32 %s28, %s29
    %s49 = sshra.s32 %s30, 7
    %s50 = sand.u32 %s30, 127
    %s51 = sadd.s32 %s49, %s48
    %s52 = smul.u32 %s51, 128
    %s53 = sshra.s32 %s30, 7
    %s54 = sand.u32 %s30, 127
    %s55 = sadd.s32 %s52, %s54
    %s56 = sld [smem:[#allocation3 + %s55]]
    %s57 = sadd.s32 %s47, %s43
    %s58 = sshra.s32 %s39, 7
    %s59 = sand.u32 %s39, 127
    %s60 = sadd.s32 %s58, %s57
    %s61 = smul.u32 %s60, 128
    %s62 = sshra.s32 %s39, 7
    %s63 = sand.u32 %s39, 127
    %s64 = sadd.s32 %s61, %s63
    %s65 = sld [smem:[#allocation3 + %s64]]
    %s66 = ssub.s32 %s28, %s47
    %s67 = ssub.s32 %s29, %s43
    %s68 = sor.u32 %s66, %s67
    %s69 = ssub.s32 %s56, %s65
    %s70 = sor.u32 %s68, %s69
    %p71 = scmp.eq.s32.totalorder %s70, 0
    %s73 = sadd.s32 %s72, 1
    %s74 = scalar_select %p71, %s72, %s73
    %p77 = pneg %p71
    %p78 = scmp.eq.s32.totalorder %s21, 1
    %p79 = por %p77, %p78
    %p80 = scmp.ne.s32.totalorder %s72, %s75
    %p81 = scmp.eq.s32.totalorder %s21, 0
    %p82 = por %p80, %p81
    %p83 = scmp.ne.s32.totalorder %s72, %s75
    %p84 = scmp.eq.s32.totalorder %s26, 1
    %p85 = por %p83, %p84
    %p86 = scmp.ne.s32.totalorder %s75, %s76
    %p87 = scmp.eq.s32.totalorder %s26, 0
    %p88 = por %p86, %p87
    %p89 = scmp.ne.s32.totalorder %s75, %s76
    %p90 = scmp.eq.s32.totalorder %s27, 1
    %p91 = por %p89, %p90
    %p93 = scmp.ne.s32.totalorder %s76, %s92
    %p94 = scmp.eq.s32.totalorder %s27, 0
    %p95 = por %p93, %p94
    %s96 = ssub.s32 %s28, %s47
    %p97 = scmp.eq.s32.totalorder %s96, 0
    %s99 = sadd.s32 %s98, 1
    %s100 = scalar_select %p97, %s98, %s99
    %p103 = pneg %p97
    %p104 = scmp.eq.s32.totalorder %s21, 1
    %p105 = por %p103, %p104
    %p106 = scmp.ne.s32.totalorder %s98, %s101
    %p107 = scmp.eq.s32.totalorder %s21, 0
    %p108 = por %p106, %p107
    %p109 = scmp.ne.s32.totalorder %s98, %s101
    %p110 = scmp.eq.s32.totalorder %s26, 1
    %p111 = por %p109, %p110
    %p112 = scmp.ne.s32.totalorder %s101, %s102
    %p113 = scmp.eq.s32.totalorder %s26, 0
    %p114 = por %p112, %p113
    %p115 = scmp.ne.s32.totalorder %s101, %s102
    %p116 = scmp.eq.s32.totalorder %s27, 1
    %p117 = por %p115, %p116
    %p119 = scmp.ne.s32.totalorder %s102, %s118
    %p120 = scmp.eq.s32.totalorder %s27, 0
    %p121 = por %p119, %p120
    %s122 = ssub.s32 %s28, %s47
    %p123 = scmp.eq.s32.totalorder %s122, 0
    %s125 = sadd.s32 %s124, 1
    %s126 = scalar_select %p123, %s124, %s125
    %p129 = pneg %p123
    %p130 = scmp.eq.s32.totalorder %s21, 1
    %p131 = por %p129, %p130
    %p132 = scmp.ne.s32.totalorder %s124, %s127
    %p133 = scmp.eq.s32.totalorder %s21, 0
    %p134 = por %p132, %p133
    %p135 = scmp.ne.s32.totalorder %s124, %s127
    %p136 = scmp.eq.s32.totalorder %s26, 1
    %p137 = por %p135, %p136
    %p138 = scmp.ne.s32.totalorder %s127, %s128
    %p139 = scmp.eq.s32.totalorder %s26, 0
    %p140 = por %p138, %p139
    %p141 = scmp.ne.s32.totalorder %s127, %s128
    %p142 = scmp.eq.s32.totalorder %s27, 1
    %p143 = por %p141, %p142
    %p145 = scmp.ne.s32.totalorder %s128, %s144
    %p146 = scmp.eq.s32.totalorder %s27, 0
    %p147 = por %p145, %p146
    %s148 = ssub.s32 %s28, %s47
    %s149 = ssub.s32 %s29, %s43
    %s150 = sor.u32 %s148, %s149
    %p151 = scmp.eq.s32.totalorder %s150, 0
    %s153 = sadd.s32 %s152, 1
    %s154 = scalar_select %p151, %s152, %s153
    %p157 = pneg %p151
    %p158 = scmp.eq.s32.totalorder %s21, 1
    %p159 = por %p157, %p158
    %p160 = scmp.ne.s32.totalorder %s152, %s155
    %p161 = scmp.eq.s32.totalorder %s21, 0
    %p162 = por %p160, %p161
    %p163 = scmp.ne.s32.totalorder %s152, %s155
    %p164 = scmp.eq.s32.totalorder %s26, 1
    %p165 = por %p163, %p164
    %p166 = scmp.ne.s32.totalorder %s155, %s156
    %p167 = scmp.eq.s32.totalorder %s26, 0
    %p168 = por %p166, %p167
    %p169 = scmp.ne.s32.totalorder %s155, %s156
    %p170 = scmp.eq.s32.totalorder %s27, 1
    %p171 = por %p169, %p170
    %p173 = scmp.ne.s32.totalorder %s156, %s172
    %p174 = scmp.eq.s32.totalorder %s27, 0
    %p175 = por %p173, %p174
    %p176 = scmp.le.s32.totalorder 1, %s21
    %p177 = scmp.lt.s32.totalorder %s21, 3
    %p178 = pnand %p176, %p177
    %p179 = pneg %p178
    // Predicated region
    $region9: #{bigcn_forward.2} parent=5 // pred_check
      _
    $region10: #{bigcn_forward.2} parent=5 // pred_check_branch
      %181 = sbr.rel (%p178) target = $region12
    $region11: #{bigcn_forward.2} parent=5 // pred_region
      %s182 = ssub.s32 %s21, 1
    $region12: #{bigcn_forward.2} parent=5 // pred_fallthru
      _
    %p183 = scmp.lt.s32.totalorder %s21, 2
    // Predicated region
    $region13: #{bigcn_forward.2} parent=5 // pred_check
      %p184 = pneg %p183
    $region14: #{bigcn_forward.2} parent=5 // pred_check_branch
      %186 = sbr.rel (%p184) target = $region16
    $region15: #{bigcn_forward.2} parent=5 // pred_region
      // Predicated region
      $region17: #{bigcn_forward.2} parent=15 // pred_check
        %p187 = pneg %p82
      $region18: #{bigcn_forward.2} parent=15 // pred_check_branch
        %189 = sbr.rel (%p187) target = $region20
      $region19: #{bigcn_forward.2} parent=15 // pred_region
        %s190 = sadd.s32 %s28, %s29
        %s191 = sshra.s32 %s30, 7
        %s192 = sand.u32 %s30, 127
        %s193 = sadd.s32 %s191, %s190
        %s194 = smul.u32 %s193, 128
        %s195 = sshra.s32 %s30, 7
        %s196 = sand.u32 %s30, 127
        %s197 = sadd.s32 %s194, %s196
        %s198 = sld [smem:[#allocation3 + %s197]]
        %s199 = smul.u32 16, %s29
        %p200 = scmp.lt.s32.totalorder %s28, 1
        %s201 = scalar_select %p200, %s28, 1
        %p202 = scmp.lt.s32.totalorder %s199, 15
        %s203 = scalar_select %p202, %s199, 15
        %p204 = scmp.lt.s32.totalorder %s198, 0
        %s205 = scalar_select %p204, %s198, 0
        %s206 = sadd.s32 %s205, %s203
        %s207 = smul.addr %s201, 16
        %s208 = sadd.s32 %s206, %s207
        %s209 = smul.addr %s208, 4
        %s210 = scalar_lea.vmem %s2, %s209
        %s211 = sadd.s32 %s28, %s29
        %s212 = sshra.s32 %s30, 7
        %s213 = sand.u32 %s30, 127
        %s214 = sadd.s32 %s212, %s211
        %s215 = smul.u32 %s214, 128
        %s216 = sshra.s32 %s30, 7
        %s217 = sand.u32 %s30, 127
        %s218 = sadd.s32 %s215, %s217
        %s219 = sld [smem:[#allocation3 + %s218]]
        %s220 = smul.u32 16, %s29
      $region20: #{bigcn_forward.2} parent=15 // pred_fallthru
        _
      // Predicated region
      $region21: #{bigcn_forward.2} parent=15 // pred_check
        %p221 = pneg %p108
      $region22: #{bigcn_forward.2} parent=15 // pred_check_branch
        %223 = sbr.rel (%p221) target = $region24
      $region23: #{bigcn_forward.2} parent=15 // pred_region
        %p224 = scmp.lt.s32.totalorder %s28, 1
        %s225 = scalar_select %p224, %s28, 1
        %s226 = smul.addr %s225, 16
        %s227 = smul.addr %s226, 4
        %s228 = scalar_lea.vmem %s3, %s227
      $region24: #{bigcn_forward.2} parent=15 // pred_fallthru
        _
      // Predicated region
      $region25: #{bigcn_forward.2} parent=15 // pred_check
        %p229 = pneg %p134
      $region26: #{bigcn_forward.2} parent=15 // pred_check_branch
        %231 = sbr.rel (%p229) target = $region28
      $region27: #{bigcn_forward.2} parent=15 // pred_region
        %p232 = scmp.lt.s32.totalorder %s28, 1
        %s233 = scalar_select %p232, %s28, 1
        %s234 = scalar_lea.vmem %s4, %s233
      $region28: #{bigcn_forward.2} parent=15 // pred_fallthru
        _
    $region16: #{bigcn_forward.2} parent=5 // pred_fallthru
      _
    %p235 = scmp.le.s32.totalorder 1, %s21
    %p236 = scmp.lt.s32.totalorder %s21, 3
    %p237 = pnand %p235, %p236
    %p238 = pneg %p237
    // Predicated region
    $region29: #{bigcn_forward.2} parent=5 // pred_check
      _
    $region30: #{bigcn_forward.2} parent=5 // pred_check_branch
      %240 = sbr.rel (%p237) target = $region32
    $region31: #{bigcn_forward.2} parent=5 // pred_region
      %s241 = ssub.s32 %s21, 1
      %s242 = sadd.s32 %s31, %s32
      %s243 = sshra.s32 %s33, 7
      %s244 = sand.u32 %s33, 127
      %s245 = sadd.s32 %s243, %s242
      %s246 = smul.u32 %s245, 128
      %s247 = sshra.s32 %s33, 7
      %s248 = sand.u32 %s33, 127
      %s249 = sadd.s32 %s246, %s248
      %s250 = sld [smem:[#allocation3 + %s249]]
      %s251 = smul.u32 16, %s32
      %p252 = scmp.lt.s32.totalorder %s31, 1
      %s253 = scalar_select %p252, %s31, 1
      %p254 = scmp.lt.s32.totalorder %s251, 15
      %s255 = scalar_select %p254, %s251, 15
      %p256 = scmp.lt.s32.totalorder %s250, 0
      %s257 = scalar_select %p256, %s250, 0
      %s258 = sadd.s32 %s257, %s255
      %s259 = smul.addr %s253, 16
      %s260 = sadd.s32 %s258, %s259
      %s261 = smul.addr %s260, 4
      %s262 = scalar_lea.vmem %s2, %s261
      %p263 = pneg %p88
      %p264 = pneg %p85
      %p265 = scmp.lt.s32.totalorder %s31, 1
      %s266 = scalar_select %p265, %s31, 1
      %s267 = smul.addr %s266, 16
      %s268 = smul.addr %s267, 4
      %s269 = scalar_lea.vmem %s3, %s268
      %p270 = pneg %p114
      %p271 = pneg %p111
      %p272 = scmp.lt.s32.totalorder %s31, 1
      %s273 = scalar_select %p272, %s31, 1
      %s274 = scalar_lea.vmem %s4, %s273
      %p275 = pneg %p140
      %p276 = pneg %p137
      %p277 = pneg %p168
      %p278 = pneg %p165
      %s279 = smul.u32 16, %s32
      %p280 = scmp.lt.s32.totalorder %s31, 1
      %s281 = scalar_select %p280, %s31, 1
      %p282 = scmp.lt.s32.totalorder %s279, 15
      %s283 = scalar_select %p282, %s279, 15
      %s284 = smul.addr %s281, 16
      %s285 = sadd.s32 %s283, %s284
      %s286 = smul.addr %s285, 8
      %s287 = scalar_lea.vmem %s5, %s286
      %s288 = sadd.s32 %s31, %s32
      %s289 = sshra.s32 %s33, 7
      %s290 = sand.u32 %s33, 127
      %s291 = sadd.s32 %s289, %s288
      %s292 = smul.u32 %s291, 128
      %s293 = sshra.s32 %s33, 7
      %s294 = sand.u32 %s33, 127
      %s295 = sadd.s32 %s292, %s294
      %s296 = sld [smem:[#allocation3 + %s295]]
      %s297 = smul.u32 16, %s32
      %p298 = scmp.lt.s32.totalorder %s31, 1
      %s299 = scalar_select %p298, %s31, 1
      %p300 = scmp.lt.s32.totalorder %s297, 15
      %s301 = scalar_select %p300, %s297, 15
      %p302 = scmp.lt.s32.totalorder %s296, 0
      %s303 = scalar_select %p302, %s296, 0
      %s304 = sadd.s32 %s303, %s301
      %s305 = smul.addr %s299, 16
      %s306 = sadd.s32 %s304, %s305
      %s307 = smul.addr %s306, 4
      %s308 = scalar_lea.vmem %s2, %s307
      %s309 = sadd.s32 %s31, %s32
      %s310 = sshra.s32 %s33, 7
      %s311 = sand.u32 %s33, 127
      %s312 = sadd.s32 %s310, %s309
      %s313 = smul.u32 %s312, 128
      %s314 = sshra.s32 %s33, 7
      %s315 = sand.u32 %s33, 127
      %s316 = sadd.s32 %s313, %s315
      %s317 = sld [smem:[#allocation3 + %s316]]
      %s318 = smul.u32 16, %s32
      %p319 = scmp.lt.s32.totalorder %s31, 1
      %s320 = scalar_select %p319, %s31, 1
      %s321 = smul.addr %s320, 16
      %s322 = smul.addr %s321, 4
      %s323 = scalar_lea.vmem %s3, %s322
      %p324 = scmp.lt.s32.totalorder %s31, 1
      %s325 = scalar_select %p324, %s31, 1
      %s326 = scalar_lea.vmem %s4, %s325
      %s327 = smul.u32 16, %s32
      %p328 = scmp.lt.s32.totalorder %s31, 1
      %s329 = scalar_select %p328, %s31, 1
      %p330 = scmp.lt.s32.totalorder %s327, 15
      %s331 = scalar_select %p330, %s327, 15
      %s332 = smul.addr %s329, 16
      %s333 = sadd.s32 %s331, %s332
      %s334 = smul.addr %s333, 8
      %s335 = scalar_lea.vmem %s5, %s334
      %s336 = smul.u32 16, %s32
      %s338 = sadd.s32 %s31, %s32
      %p339 = scmp.eq.s32.totalorder %s33, 0
      // Predicated region
      $region33: #{bigcn_forward.2} parent=31 // pred_check
        %p340 = pneg %p339
      $region34: #{bigcn_forward.2} parent=31 // pred_check_branch
        %342 = sbr.rel (%p340) target = $region36
      $region35: #{bigcn_forward.2} parent=31 // pred_region
        %343 = vst [vmem:[%s335] sm:$0xff] 0.0
        %344 = vst [vmem:[%s335 + $0x8] sm:$0xff] 0.0
        %345 = vst [vmem:[%s335 + $0x10] sm:$0xff] 0.0
        %346 = vst [vmem:[%s335 + $0x18] sm:$0xff] 0.0
        %347 = vst [vmem:[%s335 + $0x20] sm:$0xff] 0.0
        %348 = vst [vmem:[%s335 + $0x28] sm:$0xff] 0.0
        %349 = vst [vmem:[%s335 + $0x30] sm:$0xff] 0.0
        %350 = vst [vmem:[%s335 + $0x38] sm:$0xff] 0.0
        %351 = vst [vmem:[%s335 + $0x40] sm:$0xff] 0.0
        %352 = vst [vmem:[%s335 + $0x48] sm:$0xff] 0.0
        %353 = vst [vmem:[%s335 + $0x50] sm:$0xff] 0.0
        %354 = vst [vmem:[%s335 + $0x58] sm:$0xff] 0.0
        %355 = vst [vmem:[%s335 + $0x60] sm:$0xff] 0.0
        %356 = vst [vmem:[%s335 + $0x68] sm:$0xff] 0.0
        %357 = vst [vmem:[%s335 + $0x70] sm:$0xff] 0.0
        %358 = vst [vmem:[%s335 + $0x78] sm:$0xff] 0.0
      $region36: #{bigcn_forward.2} parent=31 // pred_fallthru
        _
      %s359 = sld [smem:[#allocation4 + %s338]]
      %p360 = scmp.lt.s32.totalorder %s33, %s359
      // Predicated region
      $region37: #{bigcn_forward.2} parent=31 // pred_check
        %p361 = pneg %p360
      $region38: #{bigcn_forward.2} parent=31 // pred_check_branch
        %363 = sbr.rel (%p361) target = $region40
      $region39: #{bigcn_forward.2} parent=31 // pred_region
        %s364 = sshra.s32 %s33, 7
        %s365 = sand.u32 %s33, 127
        %s366 = sadd.s32 %s364, %s338
        %s367 = smul.u32 %s366, 128
        %s368 = sshra.s32 %s33, 7
        %s369 = sand.u32 %s33, 127
        %s370 = sadd.s32 %s367, %s369
        %s371 = sld [smem:[#allocation3 + %s370]]
        %s372 = smul.u32 %s371, 128
        %s373 = sshra.s32 %s372, 3
        %s374 = sand.u32 %s372, 7
        %s375 = smul.addr %s373, 4
        %s376 = scalar_lea.vmem %s323, %s375
        %v377 = vld [vmem:[%s376] sm:$0xf]
        %v378 = vld [vmem:[%s376 + $0x4] sm:$0xf]
        %v379 = vld [vmem:[%s376 + $0x8] sm:$0xf]
        %v380 = vld [vmem:[%s376 + $0xc] sm:$0xf]
        %v381 = vld [vmem:[%s376 + $0x10] sm:$0xf]
        %v382 = vld [vmem:[%s376 + $0x14] sm:$0xf]
        %v383 = vld [vmem:[%s376 + $0x18] sm:$0xf]
        %v384 = vld [vmem:[%s376 + $0x1c] sm:$0xf]
        %v385 = vld [vmem:[%s376 + $0x20] sm:$0xf]
        %v386 = vld [vmem:[%s376 + $0x24] sm:$0xf]
        %v387 = vld [vmem:[%s376 + $0x28] sm:$0xf]
        %v388 = vld [vmem:[%s376 + $0x2c] sm:$0xf]
        %v389 = vld [vmem:[%s376 + $0x30] sm:$0xf]
        %v390 = vld [vmem:[%s376 + $0x34] sm:$0xf]
        %v391 = vld [vmem:[%s376 + $0x38] sm:$0xf]
        %v392 = vld [vmem:[%s376 + $0x3c] sm:$0xf]
        %v393 = vld [vmem:[%s335] sm:$0xff]
        %v394 = vld [vmem:[%s335 + $0x8] sm:$0xff]
        %v395 = vld [vmem:[%s335 + $0x10] sm:$0xff]
        %v396 = vld [vmem:[%s335 + $0x18] sm:$0xff]
        %v397 = vld [vmem:[%s335 + $0x20] sm:$0xff]
        %v398 = vld [vmem:[%s335 + $0x28] sm:$0xff]
        %v399 = vld [vmem:[%s335 + $0x30] sm:$0xff]
        %v400 = vld [vmem:[%s335 + $0x38] sm:$0xff]
        %v401 = vld [vmem:[%s335 + $0x40] sm:$0xff]
        %v402 = vld [vmem:[%s335 + $0x48] sm:$0xff]
        %v403 = vld [vmem:[%s335 + $0x50] sm:$0xff]
        %v404 = vld [vmem:[%s335 + $0x58] sm:$0xff]
        %v405 = vld [vmem:[%s335 + $0x60] sm:$0xff]
        %v406 = vld [vmem:[%s335 + $0x68] sm:$0xff]
        %v407 = vld [vmem:[%s335 + $0x70] sm:$0xff]
        %v408 = vld [vmem:[%s335 + $0x78] sm:$0xff]
        %v409 = vld [vmem:[%s308] sm:$0xf]
        %v410 = vld [vmem:[%s308 + $0x4] sm:$0xf]
        %v411 = vld [vmem:[%s308 + $0x8] sm:$0xf]
        %v412 = vld [vmem:[%s308 + $0xc] sm:$0xf]
        %v413 = vld [vmem:[%s308 + $0x10] sm:$0xf]
        %v414 = vld [vmem:[%s308 + $0x14] sm:$0xf]
        %v415 = vld [vmem:[%s308 + $0x18] sm:$0xf]
        %v416 = vld [vmem:[%s308 + $0x1c] sm:$0xf]
        %v417 = vld [vmem:[%s308 + $0x20] sm:$0xf]
        %v418 = vld [vmem:[%s308 + $0x24] sm:$0xf]
        %v419 = vld [vmem:[%s308 + $0x28] sm:$0xf]
        %v420 = vld [vmem:[%s308 + $0x2c] sm:$0xf]
        %v421 = vld [vmem:[%s308 + $0x30] sm:$0xf]
        %v422 = vld [vmem:[%s308 + $0x34] sm:$0xf]
        %v423 = vld [vmem:[%s308 + $0x38] sm:$0xf]
        %v424 = vld [vmem:[%s308 + $0x3c] sm:$0xf]
        %v441 = vunpack.c.l.b16 %v409
        %v442 = vunpack.c.l.b16 %v410
        %v443 = vunpack.c.l.b16 %v411
        %v444 = vunpack.c.l.b16 %v412
        %v445 = vunpack.c.l.b16 %v413
        %v446 = vunpack.c.l.b16 %v414
        %v447 = vunpack.c.l.b16 %v415
        %v448 = vunpack.c.l.b16 %v416
        %v449 = vunpack.c.l.b16 %v417
        %v450 = vunpack.c.l.b16 %v418
        %v451 = vunpack.c.l.b16 %v419
        %v452 = vunpack.c.l.b16 %v420
        %v453 = vunpack.c.l.b16 %v421
        %v454 = vunpack.c.l.b16 %v422
        %v455 = vunpack.c.l.b16 %v423
        %v456 = vunpack.c.l.b16 %v424
        %v457 = vpack.c.b16 %v442, %v441
        %v458 = vpack.c.b16 %v444, %v443
        %v459 = vpack.c.b16 %v446, %v445
        %v460 = vpack.c.b16 %v448, %v447
        %v461 = vpack.c.b16 %v450, %v449
        %v462 = vpack.c.b16 %v452, %v451
        %v463 = vpack.c.b16 %v454, %v453
        %v464 = vpack.c.b16 %v456, %v455
        %v489 = vunpack.c.l.b16 %v377
        %v490 = vunpack.c.l.b16 %v378
        %v491 = vunpack.c.l.b16 %v379
        %v492 = vunpack.c.l.b16 %v380
        %v493 = vunpack.c.l.b16 %v381
        %v494 = vunpack.c.l.b16 %v382
        %v495 = vunpack.c.l.b16 %v383
        %v496 = vunpack.c.l.b16 %v384
        %v497 = vunpack.c.l.b16 %v385
        %v498 = vunpack.c.l.b16 %v386
        %v499 = vunpack.c.l.b16 %v387
        %v500 = vunpack.c.l.b16 %v388
        %v501 = vunpack.c.l.b16 %v389
        %v502 = vunpack.c.l.b16 %v390
        %v503 = vunpack.c.l.b16 %v391
        %v504 = vunpack.c.l.b16 %v392
        %v505 = vpack.c.b16 %v490, %v489
        %v506 = vpack.c.b16 %v492, %v491
        %v507 = vpack.c.b16 %v494, %v493
        %v508 = vpack.c.b16 %v496, %v495
        %v509 = vpack.c.b16 %v498, %v497
        %v510 = vpack.c.b16 %v500, %v499
        %v511 = vpack.c.b16 %v502, %v501
        %v512 = vpack.c.b16 %v504, %v503
        %521 = vmatprep.subr.bf16.mxu0 0
        %522 = vmatpush1.bf16.msra.mxu0 %v512
        %523 = vmatprep.subr.bf16.mxu0 0
        %524 = vmatpush1.bf16.msra.mxu0 %v511
        %525 = vmatprep.subr.bf16.mxu0 0
        %526 = vmatpush1.bf16.msra.mxu0 %v510
        %527 = vmatprep.subr.bf16.mxu0 0
        %528 = vmatpush1.bf16.msra.mxu0 %v509
        %529 = vmatprep.subr.bf16.mxu0 0
        %530 = vmatpush1.bf16.msra.mxu0 %v508
        %531 = vmatprep.subr.bf16.mxu0 0
        %532 = vmatpush1.bf16.msra.mxu0 %v507
        %533 = vmatprep.subr.bf16.mxu0 0
        %534 = vmatpush1.bf16.msra.mxu0 %v506
        %535 = vmatprep.subr.bf16.mxu0 0
        %536 = vmatpush1.bf16.msra.mxu0 %v505
        %537 = vmatprep.subr.bf16.mxu0 0
        %538 = vmatpush2.bf16.msra.mxu0 0
        %539 = vmatprep.subr.bf16.mxu0 0
        %540 = vmatpush2.bf16.msra.mxu0 0
        %541 = vmatprep.subr.bf16.mxu0 0
        %542 = vmatpush2.bf16.msra.mxu0 0
        %543 = vmatprep.subr.bf16.mxu0 0
        %544 = vmatpush2.bf16.msra.mxu0 0
        %545 = vmatprep.subr.bf16.mxu0 0
        %546 = vmatpush2.bf16.msra.mxu0 0
        %547 = vmatprep.subr.bf16.mxu0 0
        %548 = vmatpush2.bf16.msra.mxu0 0
        %549 = vmatprep.subr.bf16.mxu0 0
        %550 = vmatpush2.bf16.msra.mxu0 0
        %551 = vmatprep.subr.bf16.mxu0 0
        %552 = vmatpush2.bf16.msra.mxu0 0
        %553 = vmatprep.mubr.bf16.mxu0 0
        %554 = vmatmul.mubr.bf16.gmra.mxu0 %v457
        %v555 = vpop.f32.mrf.mxu0
        %v556 = vadd.f32 0.0, %v555
        %v557 = vpop.f32.mrf.mxu0
        %v558 = vpop.f32.mrf.mxu0
        %v559 = vadd.f32 0.0, %v558
        %v560 = vpop.f32.mrf.mxu0
        %561 = vmatprep.mubr.bf16.mxu0 0
        %562 = vmatmul.mubr.bf16.gmra.mxu0 %v458
        %v563 = vpop.f32.mrf.mxu0
        %v564 = vadd.f32 0.0, %v563
        %v565 = vpop.f32.mrf.mxu0
        %v566 = vpop.f32.mrf.mxu0
        %v567 = vadd.f32 0.0, %v566
        %v568 = vpop.f32.mrf.mxu0
        %569 = vmatprep.mubr.bf16.mxu0 0
        %570 = vmatmul.mubr.bf16.gmra.mxu0 %v459
        %v571 = vpop.f32.mrf.mxu0
        %v572 = vadd.f32 0.0, %v571
        %v573 = vpop.f32.mrf.mxu0
        %v574 = vpop.f32.mrf.mxu0
        %v575 = vadd.f32 0.0, %v574
        %v576 = vpop.f32.mrf.mxu0
        %577 = vmatprep.mubr.bf16.mxu0 0
        %578 = vmatmul.mubr.bf16.gmra.mxu0 %v460
        %v579 = vpop.f32.mrf.mxu0
        %v580 = vadd.f32 0.0, %v579
        %v581 = vpop.f32.mrf.mxu0
        %v582 = vpop.f32.mrf.mxu0
        %v583 = vadd.f32 0.0, %v582
        %v584 = vpop.f32.mrf.mxu0
        %585 = vmatprep.mubr.bf16.mxu0 0
        %586 = vmatmul.mubr.bf16.gmra.mxu0 %v461
        %v587 = vpop.f32.mrf.mxu0
        %v588 = vadd.f32 0.0, %v587
        %v589 = vpop.f32.mrf.mxu0
        %v590 = vpop.f32.mrf.mxu0
        %v591 = vadd.f32 0.0, %v590
        %v592 = vpop.f32.mrf.mxu0
        %593 = vmatprep.mubr.bf16.mxu0 0
        %594 = vmatmul.mubr.bf16.gmra.mxu0 %v462
        %v595 = vpop.f32.mrf.mxu0
        %v596 = vadd.f32 0.0, %v595
        %v597 = vpop.f32.mrf.mxu0
        %v598 = vpop.f32.mrf.mxu0
        %v599 = vadd.f32 0.0, %v598
        %v600 = vpop.f32.mrf.mxu0
        %601 = vmatprep.mubr.bf16.mxu0 0
        %602 = vmatmul.mubr.bf16.gmra.mxu0 %v463
        %v603 = vpop.f32.mrf.mxu0
        %v604 = vadd.f32 0.0, %v603
        %v605 = vpop.f32.mrf.mxu0
        %v606 = vpop.f32.mrf.mxu0
        %v607 = vadd.f32 0.0, %v606
        %v608 = vpop.f32.mrf.mxu0
        %609 = vmatprep.mubr.bf16.mxu0 0
        %610 = vmatmul.mubr.bf16.gmra.mxu0 %v464
        %v611 = vpop.f32.mrf.mxu0
        %v612 = vadd.f32 0.0, %v611
        %v613 = vpop.f32.mrf.mxu0
        %v614 = vpop.f32.mrf.mxu0
        %v615 = vadd.f32 0.0, %v614
        %v616 = vpop.f32.mrf.mxu0
        %617 = vdwg.mxu0
        %v618 = vadd.f32 %v393, %v556
        %v619 = vadd.f32 %v394, %v559
        %v620 = vadd.f32 %v395, %v564
        %v621 = vadd.f32 %v396, %v567
        %v622 = vadd.f32 %v397, %v572
        %v623 = vadd.f32 %v398, %v575
        %v624 = vadd.f32 %v399, %v580
        %v625 = vadd.f32 %v400, %v583
        %v626 = vadd.f32 %v401, %v588
        %v627 = vadd.f32 %v402, %v591
        %v628 = vadd.f32 %v403, %v596
        %v629 = vadd.f32 %v404, %v599
        %v630 = vadd.f32 %v405, %v604
        %v631 = vadd.f32 %v406, %v607
        %v632 = vadd.f32 %v407, %v612
        %v633 = vadd.f32 %v408, %v615
        %634 = vst [vmem:[%s335] sm:$0xff] %v618
        %635 = vst [vmem:[%s335 + $0x8] sm:$0xff] %v619
        %636 = vst [vmem:[%s335 + $0x10] sm:$0xff] %v620
        %637 = vst [vmem:[%s335 + $0x18] sm:$0xff] %v621
        %638 = vst [vmem:[%s335 + $0x20] sm:$0xff] %v622
        %639 = vst [vmem:[%s335 + $0x28] sm:$0xff] %v623
        %640 = vst [vmem:[%s335 + $0x30] sm:$0xff] %v624
        %641 = vst [vmem:[%s335 + $0x38] sm:$0xff] %v625
        %642 = vst [vmem:[%s335 + $0x40] sm:$0xff] %v626
        %643 = vst [vmem:[%s335 + $0x48] sm:$0xff] %v627
        %644 = vst [vmem:[%s335 + $0x50] sm:$0xff] %v628
        %645 = vst [vmem:[%s335 + $0x58] sm:$0xff] %v629
        %646 = vst [vmem:[%s335 + $0x60] sm:$0xff] %v630
        %647 = vst [vmem:[%s335 + $0x68] sm:$0xff] %v631
        %648 = vst [vmem:[%s335 + $0x70] sm:$0xff] %v632
        %649 = vst [vmem:[%s335 + $0x78] sm:$0xff] %v633
      $region40: #{bigcn_forward.2} parent=31 // pred_fallthru
        _
      // Predicated region
      $region41: #{bigcn_forward.2} parent=31 // pred_check
        %p650 = pneg %p339
      $region42: #{bigcn_forward.2} parent=31 // pred_check_branch
        %652 = sbr.rel (%p650) target = $region44
      $region43: #{bigcn_forward.2} parent=31 // pred_region
        %v653 = vld [vmem:[%s335] sm:$0xff]
        %v654 = vld [vmem:[%s335 + $0x8] sm:$0xff]
        %v655 = vld [vmem:[%s335 + $0x10] sm:$0xff]
        %v656 = vld [vmem:[%s335 + $0x18] sm:$0xff]
        %v657 = vld [vmem:[%s335 + $0x20] sm:$0xff]
        %v658 = vld [vmem:[%s335 + $0x28] sm:$0xff]
        %v659 = vld [vmem:[%s335 + $0x30] sm:$0xff]
        %v660 = vld [vmem:[%s335 + $0x38] sm:$0xff]
        %v661 = vld [vmem:[%s335 + $0x40] sm:$0xff]
        %v662 = vld [vmem:[%s335 + $0x48] sm:$0xff]
        %v663 = vld [vmem:[%s335 + $0x50] sm:$0xff]
        %v664 = vld [vmem:[%s335 + $0x58] sm:$0xff]
        %v665 = vld [vmem:[%s335 + $0x60] sm:$0xff]
        %v666 = vld [vmem:[%s335 + $0x68] sm:$0xff]
        %v667 = vld [vmem:[%s335 + $0x70] sm:$0xff]
        %v668 = vld [vmem:[%s335 + $0x78] sm:$0xff]
        %v669 = vld [vmem:[%s326] sm:$0x1]
        %v671 = vlaneseq
        %v672 = vshrl.u32 %v671, 7
        %v673 = vsub.s32 0, %v672
        %v674 = vrot.slane %v669, %v673
        %v676 = vadd.f32 %v653, %v674
        %v677 = vadd.f32 %v654, %v674
        %v678 = vadd.f32 %v655, %v674
        %v679 = vadd.f32 %v656, %v674
        %v680 = vadd.f32 %v657, %v674
        %v681 = vadd.f32 %v658, %v674
        %v682 = vadd.f32 %v659, %v674
        %v683 = vadd.f32 %v660, %v674
        %v684 = vadd.f32 %v661, %v674
        %v685 = vadd.f32 %v662, %v674
        %v686 = vadd.f32 %v663, %v674
        %v687 = vadd.f32 %v664, %v674
        %v688 = vadd.f32 %v665, %v674
        %v689 = vadd.f32 %v666, %v674
        %v690 = vadd.f32 %v667, %v674
        %v691 = vadd.f32 %v668, %v674
        %692 = vst [vmem:[%s335] sm:$0xff] %v676
        %693 = vst [vmem:[%s335 + $0x8] sm:$0xff] %v677
        %694 = vst [vmem:[%s335 + $0x10] sm:$0xff] %v678
        %695 = vst [vmem:[%s335 + $0x18] sm:$0xff] %v679
        %696 = vst [vmem:[%s335 + $0x20] sm:$0xff] %v680
        %697 = vst [vmem:[%s335 + $0x28] sm:$0xff] %v681
        %698 = vst [vmem:[%s335 + $0x30] sm:$0xff] %v682
        %699 = vst [vmem:[%s335 + $0x38] sm:$0xff] %v683
        %700 = vst [vmem:[%s335 + $0x40] sm:$0xff] %v684
        %701 = vst [vmem:[%s335 + $0x48] sm:$0xff] %v685
        %702 = vst [vmem:[%s335 + $0x50] sm:$0xff] %v686
        %703 = vst [vmem:[%s335 + $0x58] sm:$0xff] %v687
        %704 = vst [vmem:[%s335 + $0x60] sm:$0xff] %v688
        %705 = vst [vmem:[%s335 + $0x68] sm:$0xff] %v689
        %706 = vst [vmem:[%s335 + $0x70] sm:$0xff] %v690
        %707 = vst [vmem:[%s335 + $0x78] sm:$0xff] %v691
      $region44: #{bigcn_forward.2} parent=31 // pred_fallthru
        _
      %s708 = smul.u32 16, %s32
      %p709 = scmp.lt.s32.totalorder %s31, 1
      %s710 = scalar_select %p709, %s31, 1
      %p711 = scmp.lt.s32.totalorder %s708, 15
      %s712 = scalar_select %p711, %s708, 15
      %s713 = smul.addr %s710, 16
      %s714 = sadd.s32 %s712, %s713
      %s715 = smul.addr %s714, 8
      %s716 = scalar_lea.vmem %s5, %s715
      // Predicated region
      $region45: #{bigcn_forward.2} parent=31 // pred_check
        %p717 = pneg %p165
      $region46: #{bigcn_forward.2} parent=31 // pred_check_branch
        %719 = sbr.rel (%p717) target = $region48
      $region47: #{bigcn_forward.2} parent=31 // pred_region
        %s720 = smul.u32 16, %s32
      $region48: #{bigcn_forward.2} parent=31 // pred_fallthru
        _
    $region32: #{bigcn_forward.2} parent=5 // pred_fallthru
      _
    %p721 = scmp.le.s32.totalorder 2, %s21
    // Predicated region
    $region49: #{bigcn_forward.2} parent=5 // pred_check
      %p722 = pneg %p721
    $region50: #{bigcn_forward.2} parent=5 // pred_check_branch
      %724 = sbr.rel (%p722) target = $region52
    $region51: #{bigcn_forward.2} parent=5 // pred_region
      %s725 = ssub.s32 %s21, 2
      // Predicated region
      $region53: #{bigcn_forward.2} parent=51 // pred_check
        %p726 = pneg %p171
      $region54: #{bigcn_forward.2} parent=51 // pred_check_branch
        %728 = sbr.rel (%p726) target = $region56
      $region55: #{bigcn_forward.2} parent=51 // pred_region
        %s729 = smul.u32 16, %s35
        %p730 = scmp.lt.s32.totalorder %s34, 1
        %s731 = scalar_select %p730, %s34, 1
        %p732 = scmp.lt.s32.totalorder %s729, 15
        %s733 = scalar_select %p732, %s729, 15
        %s734 = smul.addr %s731, 16
        %s735 = sadd.s32 %s733, %s734
        %s736 = smul.addr %s735, 8
        %s737 = scalar_lea.vmem %s5, %s736
      $region56: #{bigcn_forward.2} parent=51 // pred_fallthru
        _
    $region52: #{bigcn_forward.2} parent=5 // pred_fallthru
      _
  $region6: #{bigcn_forward.2} parent=0 // loop_footer
    %s25 = sadd.s32 1, %s21
  $region7: #{bigcn_forward.2} parent=0 // loop_footer_branch
    %20 = sbr.rel target = $region3
  $region8: #{bigcn_forward.2} parent=0 // loop_exit
    _

// kernel: bigcn_forward.3
$region0: #{bigcn_forward.3}
  #allocation0 [shape = 'u32[]', space=smem, size = 0x4, offset = 0x4, fixed_abs, tag = 'smem constant byte address 0x4 - core index']
  #allocation1 [shape = 'u32[144,128]{1,0:T(1,128)}', space=vmem, size = 0x12000, scoped, tag = 'internal scratch']
  #allocation2 [shape = 's32[1]{0}', space=sflag, size = 0x4, scoped, tag = 'scoped memory for bigcn_forward.3']
  #allocation3 [shape = 'u8[1024]{0}', space=smem, size = 0x400, scoped, tag = 'prefetched SMEM operand 0']
  #allocation4 [shape = 'u8[512]{0}', space=smem, size = 0x200, scoped, tag = 'prefetched SMEM operand 1']
  %s0 = inlined_call_operand.vmem [shape: s32[2,1], index: 0, kind: input, shape index: {}]
  %s1 = inlined_call_operand.vmem [shape: s32[2], index: 1, kind: input, shape index: {}]
  %s2 = inlined_call_operand.vmem [shape: bf16[2,128,128], index: 2, kind: input, shape index: {}]
  %s3 = inlined_call_operand.vmem [shape: bf16[2,128,128], index: 3, kind: input, shape index: {}]
  %s4 = inlined_call_operand.vmem [shape: f32[2,1,128], index: 4, kind: input, shape index: {}]
  %s5 = inlined_call_operand.vmem [shape: f32[2,128,128], index: 5, kind: output, shape index: {}]
  %s6 = sld [smem:[#allocation0]]
  $region57: #{bigcn_forward.3} parent=0
    _
  %s8 = ssub.s32 1, %s6
  %s9 = scalar_select 0, %s8, %s6
  %s10 = sshll.u32 %s0, 4
  %s11 = int_to_ptr.vmem [resolvable:$true] %s10
  %13 = dma.vmem_to_smem %s11, 32, [#allocation3], [#allocation2]
  %s14 = sshll.u32 %s1, 4
  %s15 = int_to_ptr.vmem [resolvable:$true] %s14
  %17 = dma.vmem_to_smem %s15, 16, [#allocation4], [#allocation2]
  %18 = dma.done [#allocation2], 48
  %19 = sfence
  loop: start=0, step=1, limit=4
  $region2: #{bigcn_forward.3} parent=0 // loop_pre_header
    _
  $region3: #{bigcn_forward.3} parent=0 // loop_header
    %s21 = sphi 0, %s25
    %p22 = scmp.ge.s32.totalorder %s21, 4
    %s28 = sphi 0, %s47
    %s29 = sphi 0, %s43
    %s30 = sphi 0, %s39
    %s31 = sphi 0, %s28
    %s32 = sphi 0, %s29
    %s33 = sphi 0, %s30
    %s34 = sphi 0, %s31
    %s35 = sphi 0, %s32
    %s36 = sphi 0, %s33
    %s72 = sphi 0, %s74
    %s75 = sphi 0, %s72
    %s76 = sphi 0, %s75
    %s92 = sphi 0, %s76
    %s98 = sphi 0, %s100
    %s101 = sphi 0, %s98
    %s102 = sphi 0, %s101
    %s118 = sphi 0, %s102
    %s124 = sphi 0, %s126
    %s127 = sphi 0, %s124
    %s128 = sphi 0, %s127
    %s144 = sphi 0, %s128
    %s152 = sphi 0, %s154
    %s155 = sphi 0, %s152
    %s156 = sphi 0, %s155
    %s172 = sphi 0, %s156
  $region4: #{bigcn_forward.3} parent=0 // loop_header_branch
    %24 = sbr.rel (%p22) target = $region8
  $region5: #{bigcn_forward.3} parent=0 // loop_body
    %s26 = ssub.s32 %s21, 1
    %s27 = ssub.s32 %s21, 2
    %s37 = sadd.s32 1, %s30
    %p38 = scmp.ge.s32.totalorder %s37, 1
    %s39 = scalar_select %p38, 0, %s37
    %s40 = sadd.s32 1, %s29
    %s41 = scalar_select %p38, %s40, %s29
    %p42 = scmp.ge.s32.totalorder %s41, 1
    %s43 = scalar_select %p42, 0, %s41
    %s44 = sadd.s32 1, %s28
    %s45 = scalar_select %p42, %s44, %s28
    %p46 = scmp.ge.s32.totalorder %s45, 2
    %s47 = scalar_select %p46, 0, %s45
    %s48 = sadd.s32 %s28, %s29
    %s49 = sshra.s32 %s30, 7
    %s50 = sand.u32 %s30, 127
    %s51 = sadd.s32 %s49, %s48
    %s52 = smul.u32 %s51, 128
    %s53 = sshra.s32 %s30, 7
    %s54 = sand.u32 %s30, 127
    %s55 = sadd.s32 %s52, %s54
    %s56 = sld [smem:[#allocation3 + %s55]]
    %s57 = sadd.s32 %s47, %s43
    %s58 = sshra.s32 %s39, 7
    %s59 = sand.u32 %s39, 127
    %s60 = sadd.s32 %s58, %s57
    %s61 = smul.u32 %s60, 128
    %s62 = sshra.s32 %s39, 7
    %s63 = sand.u32 %s39, 127
    %s64 = sadd.s32 %s61, %s63
    %s65 = sld [smem:[#allocation3 + %s64]]
    %s66 = ssub.s32 %s28, %s47
    %s67 = ssub.s32 %s29, %s43
    %s68 = sor.u32 %s66, %s67
    %s69 = ssub.s32 %s56, %s65
    %s70 = sor.u32 %s68, %s69
    %p71 = scmp.eq.s32.totalorder %s70, 0
    %s73 = sadd.s32 %s72, 1
    %s74 = scalar_select %p71, %s72, %s73
    %p77 = pneg %p71
    %p78 = scmp.eq.s32.totalorder %s21, 1
    %p79 = por %p77, %p78
    %p80 = scmp.ne.s32.totalorder %s72, %s75
    %p81 = scmp.eq.s32.totalorder %s21, 0
    %p82 = por %p80, %p81
    %p83 = scmp.ne.s32.totalorder %s72, %s75
    %p84 = scmp.eq.s32.totalorder %s26, 1
    %p85 = por %p83, %p84
    %p86 = scmp.ne.s32.totalorder %s75, %s76
    %p87 = scmp.eq.s32.totalorder %s26, 0
    %p88 = por %p86, %p87
    %p89 = scmp.ne.s32.totalorder %s75, %s76
    %p90 = scmp.eq.s32.totalorder %s27, 1
    %p91 = por %p89, %p90
    %p93 = scmp.ne.s32.totalorder %s76, %s92
    %p94 = scmp.eq.s32.totalorder %s27, 0
    %p95 = por %p93, %p94
    %s96 = ssub.s32 %s28, %s47
    %p97 = scmp.eq.s32.totalorder %s96, 0
    %s99 = sadd.s32 %s98, 1
    %s100 = scalar_select %p97, %s98, %s99
    %p103 = pneg %p97
    %p104 = scmp.eq.s32.totalorder %s21, 1
    %p105 = por %p103, %p104
    %p106 = scmp.ne.s32.totalorder %s98, %s101
    %p107 = scmp.eq.s32.totalorder %s21, 0
    %p108 = por %p106, %p107
    %p109 = scmp.ne.s32.totalorder %s98, %s101
    %p110 = scmp.eq.s32.totalorder %s26, 1
    %p111 = por %p109, %p110
    %p112 = scmp.ne.s32.totalorder %s101, %s102
    %p113 = scmp.eq.s32.totalorder %s26, 0
    %p114 = por %p112, %p113
    %p115 = scmp.ne.s32.totalorder %s101, %s102
    %p116 = scmp.eq.s32.totalorder %s27, 1
    %p117 = por %p115, %p116
    %p119 = scmp.ne.s32.totalorder %s102, %s118
    %p120 = scmp.eq.s32.totalorder %s27, 0
    %p121 = por %p119, %p120
    %s122 = ssub.s32 %s28, %s47
    %p123 = scmp.eq.s32.totalorder %s122, 0
    %s125 = sadd.s32 %s124, 1
    %s126 = scalar_select %p123, %s124, %s125
    %p129 = pneg %p123
    %p130 = scmp.eq.s32.totalorder %s21, 1
    %p131 = por %p129, %p130
    %p132 = scmp.ne.s32.totalorder %s124, %s127
    %p133 = scmp.eq.s32.totalorder %s21, 0
    %p134 = por %p132, %p133
    %p135 = scmp.ne.s32.totalorder %s124, %s127
    %p136 = scmp.eq.s32.totalorder %s26, 1
    %p137 = por %p135, %p136
    %p138 = scmp.ne.s32.totalorder %s127, %s128
    %p139 = scmp.eq.s32.totalorder %s26, 0
    %p140 = por %p138, %p139
    %p141 = scmp.ne.s32.totalorder %s127, %s128
    %p142 = scmp.eq.s32.totalorder %s27, 1
    %p143 = por %p141, %p142
    %p145 = scmp.ne.s32.totalorder %s128, %s144
    %p146 = scmp.eq.s32.totalorder %s27, 0
    %p147 = por %p145, %p146
    %s148 = ssub.s32 %s28, %s47
    %s149 = ssub.s32 %s29, %s43
    %s150 = sor.u32 %s148, %s149
    %p151 = scmp.eq.s32.totalorder %s150, 0
    %s153 = sadd.s32 %s152, 1
    %s154 = scalar_select %p151, %s152, %s153
    %p157 = pneg %p151
    %p158 = scmp.eq.s32.totalorder %s21, 1
    %p159 = por %p157, %p158
    %p160 = scmp.ne.s32.totalorder %s152, %s155
    %p161 = scmp.eq.s32.totalorder %s21, 0
    %p162 = por %p160, %p161
    %p163 = scmp.ne.s32.totalorder %s152, %s155
    %p164 = scmp.eq.s32.totalorder %s26, 1
    %p165 = por %p163, %p164
    %p166 = scmp.ne.s32.totalorder %s155, %s156
    %p167 = scmp.eq.s32.totalorder %s26, 0
    %p168 = por %p166, %p167
    %p169 = scmp.ne.s32.totalorder %s155, %s156
    %p170 = scmp.eq.s32.totalorder %s27, 1
    %p171 = por %p169, %p170
    %p173 = scmp.ne.s32.totalorder %s156, %s172
    %p174 = scmp.eq.s32.totalorder %s27, 0
    %p175 = por %p173, %p174
    %p176 = scmp.le.s32.totalorder 1, %s21
    %p177 = scmp.lt.s32.totalorder %s21, 3
    %p178 = pnand %p176, %p177
    %p179 = pneg %p178
    // Predicated region
    $region9: #{bigcn_forward.3} parent=5 // pred_check
      _
    $region10: #{bigcn_forward.3} parent=5 // pred_check_branch
      %181 = sbr.rel (%p178) target = $region12
    $region11: #{bigcn_forward.3} parent=5 // pred_region
      %s182 = ssub.s32 %s21, 1
    $region12: #{bigcn_forward.3} parent=5 // pred_fallthru
      _
    %p183 = scmp.lt.s32.totalorder %s21, 2
    // Predicated region
    $region13: #{bigcn_forward.3} parent=5 // pred_check
      %p184 = pneg %p183
    $region14: #{bigcn_forward.3} parent=5 // pred_check_branch
      %186 = sbr.rel (%p184) target = $region16
    $region15: #{bigcn_forward.3} parent=5 // pred_region
      // Predicated region
      $region17: #{bigcn_forward.3} parent=15 // pred_check
        %p187 = pneg %p82
      $region18: #{bigcn_forward.3} parent=15 // pred_check_branch
        %189 = sbr.rel (%p187) target = $region20
      $region19: #{bigcn_forward.3} parent=15 // pred_region
        %s190 = sadd.s32 %s28, %s29
        %s191 = sshra.s32 %s30, 7
        %s192 = sand.u32 %s30, 127
        %s193 = sadd.s32 %s191, %s190
        %s194 = smul.u32 %s193, 128
        %s195 = sshra.s32 %s30, 7
        %s196 = sand.u32 %s30, 127
        %s197 = sadd.s32 %s194, %s196
        %s198 = sld [smem:[#allocation3 + %s197]]
        %s199 = smul.u32 16, %s29
        %p200 = scmp.lt.s32.totalorder %s28, 1
        %s201 = scalar_select %p200, %s28, 1
        %p202 = scmp.lt.s32.totalorder %s199, 15
        %s203 = scalar_select %p202, %s199, 15
        %p204 = scmp.lt.s32.totalorder %s198, 0
        %s205 = scalar_select %p204, %s198, 0
        %s206 = sadd.s32 %s205, %s203
        %s207 = smul.addr %s201, 16
        %s208 = sadd.s32 %s206, %s207
        %s209 = smul.addr %s208, 4
        %s210 = scalar_lea.vmem %s2, %s209
        %s211 = sadd.s32 %s28, %s29
        %s212 = sshra.s32 %s30, 7
        %s213 = sand.u32 %s30, 127
        %s214 = sadd.s32 %s212, %s211
        %s215 = smul.u32 %s214, 128
        %s216 = sshra.s32 %s30, 7
        %s217 = sand.u32 %s30, 127
        %s218 = sadd.s32 %s215, %s217
        %s219 = sld [smem:[#allocation3 + %s218]]
        %s220 = smul.u32 16, %s29
      $region20: #{bigcn_forward.3} parent=15 // pred_fallthru
        _
      // Predicated region
      $region21: #{bigcn_forward.3} parent=15 // pred_check
        %p221 = pneg %p108
      $region22: #{bigcn_forward.3} parent=15 // pred_check_branch
        %223 = sbr.rel (%p221) target = $region24
      $region23: #{bigcn_forward.3} parent=15 // pred_region
        %p224 = scmp.lt.s32.totalorder %s28, 1
        %s225 = scalar_select %p224, %s28, 1
        %s226 = smul.addr %s225, 16
        %s227 = smul.addr %s226, 4
        %s228 = scalar_lea.vmem %s3, %s227
      $region24: #{bigcn_forward.3} parent=15 // pred_fallthru
        _
      // Predicated region
      $region25: #{bigcn_forward.3} parent=15 // pred_check
        %p229 = pneg %p134
      $region26: #{bigcn_forward.3} parent=15 // pred_check_branch
        %231 = sbr.rel (%p229) target = $region28
      $region27: #{bigcn_forward.3} parent=15 // pred_region
        %p232 = scmp.lt.s32.totalorder %s28, 1
        %s233 = scalar_select %p232, %s28, 1
        %s234 = scalar_lea.vmem %s4, %s233
      $region28: #{bigcn_forward.3} parent=15 // pred_fallthru
        _
    $region16: #{bigcn_forward.3} parent=5 // pred_fallthru
      _
    %p235 = scmp.le.s32.totalorder 1, %s21
    %p236 = scmp.lt.s32.totalorder %s21, 3
    %p237 = pnand %p235, %p236
    %p238 = pneg %p237
    // Predicated region
    $region29: #{bigcn_forward.3} parent=5 // pred_check
      _
    $region30: #{bigcn_forward.3} parent=5 // pred_check_branch
      %240 = sbr.rel (%p237) target = $region32
    $region31: #{bigcn_forward.3} parent=5 // pred_region
      %s241 = ssub.s32 %s21, 1
      %s242 = sadd.s32 %s31, %s32
      %s243 = sshra.s32 %s33, 7
      %s244 = sand.u32 %s33, 127
      %s245 = sadd.s32 %s243, %s242
      %s246 = smul.u32 %s245, 128
      %s247 = sshra.s32 %s33, 7
      %s248 = sand.u32 %s33, 127
      %s249 = sadd.s32 %s246, %s248
      %s250 = sld [smem:[#allocation3 + %s249]]
      %s251 = smul.u32 16, %s32
      %p252 = scmp.lt.s32.totalorder %s31, 1
      %s253 = scalar_select %p252, %s31, 1
      %p254 = scmp.lt.s32.totalorder %s251, 15
      %s255 = scalar_select %p254, %s251, 15
      %p256 = scmp.lt.s32.totalorder %s250, 0
      %s257 = scalar_select %p256, %s250, 0
      %s258 = sadd.s32 %s257, %s255
      %s259 = smul.addr %s253, 16
      %s260 = sadd.s32 %s258, %s259
      %s261 = smul.addr %s260, 4
      %s262 = scalar_lea.vmem %s2, %s261
      %p263 = pneg %p88
      %p264 = pneg %p85
      %p265 = scmp.lt.s32.totalorder %s31, 1
      %s266 = scalar_select %p265, %s31, 1
      %s267 = smul.addr %s266, 16
      %s268 = smul.addr %s267, 4
      %s269 = scalar_lea.vmem %s3, %s268
      %p270 = pneg %p114
      %p271 = pneg %p111
      %p272 = scmp.lt.s32.totalorder %s31, 1
      %s273 = scalar_select %p272, %s31, 1
      %s274 = scalar_lea.vmem %s4, %s273
      %p275 = pneg %p140
      %p276 = pneg %p137
      %p277 = pneg %p168
      %p278 = pneg %p165
      %s279 = smul.u32 16, %s32
      %p280 = scmp.lt.s32.totalorder %s31, 1
      %s281 = scalar_select %p280, %s31, 1
      %p282 = scmp.lt.s32.totalorder %s279, 15
      %s283 = scalar_select %p282, %s279, 15
      %s284 = smul.addr %s281, 16
      %s285 = sadd.s32 %s283, %s284
      %s286 = smul.addr %s285, 8
      %s287 = scalar_lea.vmem %s5, %s286
      %s288 = sadd.s32 %s31, %s32
      %s289 = sshra.s32 %s33, 7
      %s290 = sand.u32 %s33, 127
      %s291 = sadd.s32 %s289, %s288
      %s292 = smul.u32 %s291, 128
      %s293 = sshra.s32 %s33, 7
      %s294 = sand.u32 %s33, 127
      %s295 = sadd.s32 %s292, %s294
      %s296 = sld [smem:[#allocation3 + %s295]]
      %s297 = smul.u32 16, %s32
      %p298 = scmp.lt.s32.totalorder %s31, 1
      %s299 = scalar_select %p298, %s31, 1
      %p300 = scmp.lt.s32.totalorder %s297, 15
      %s301 = scalar_select %p300, %s297, 15
      %p302 = scmp.lt.s32.totalorder %s296, 0
      %s303 = scalar_select %p302, %s296, 0
      %s304 = sadd.s32 %s303, %s301
      %s305 = smul.addr %s299, 16
      %s306 = sadd.s32 %s304, %s305
      %s307 = smul.addr %s306, 4
      %s308 = scalar_lea.vmem %s2, %s307
      %s309 = sadd.s32 %s31, %s32
      %s310 = sshra.s32 %s33, 7
      %s311 = sand.u32 %s33, 127
      %s312 = sadd.s32 %s310, %s309
      %s313 = smul.u32 %s312, 128
      %s314 = sshra.s32 %s33, 7
      %s315 = sand.u32 %s33, 127
      %s316 = sadd.s32 %s313, %s315
      %s317 = sld [smem:[#allocation3 + %s316]]
      %s318 = smul.u32 16, %s32
      %p319 = scmp.lt.s32.totalorder %s31, 1
      %s320 = scalar_select %p319, %s31, 1
      %s321 = smul.addr %s320, 16
      %s322 = smul.addr %s321, 4
      %s323 = scalar_lea.vmem %s3, %s322
      %p324 = scmp.lt.s32.totalorder %s31, 1
      %s325 = scalar_select %p324, %s31, 1
      %s326 = scalar_lea.vmem %s4, %s325
      %s327 = smul.u32 16, %s32
      %p328 = scmp.lt.s32.totalorder %s31, 1
      %s329 = scalar_select %p328, %s31, 1
      %p330 = scmp.lt.s32.totalorder %s327, 15
      %s331 = scalar_select %p330, %s327, 15
      %s332 = smul.addr %s329, 16
      %s333 = sadd.s32 %s331, %s332
      %s334 = smul.addr %s333, 8
      %s335 = scalar_lea.vmem %s5, %s334
      %s336 = smul.u32 16, %s32
      %s338 = sadd.s32 %s31, %s32
      %p339 = scmp.eq.s32.totalorder %s33, 0
      // Predicated region
      $region33: #{bigcn_forward.3} parent=31 // pred_check
        %p340 = pneg %p339
      $region34: #{bigcn_forward.3} parent=31 // pred_check_branch
        %342 = sbr.rel (%p340) target = $region36
      $region35: #{bigcn_forward.3} parent=31 // pred_region
        %343 = vst [vmem:[%s335] sm:$0xff] 0.0
        %344 = vst [vmem:[%s335 + $0x8] sm:$0xff] 0.0
        %345 = vst [vmem:[%s335 + $0x10] sm:$0xff] 0.0
        %346 = vst [vmem:[%s335 + $0x18] sm:$0xff] 0.0
        %347 = vst [vmem:[%s335 + $0x20] sm:$0xff] 0.0
        %348 = vst [vmem:[%s335 + $0x28] sm:$0xff] 0.0
        %349 = vst [vmem:[%s335 + $0x30] sm:$0xff] 0.0
        %350 = vst [vmem:[%s335 + $0x38] sm:$0xff] 0.0
        %351 = vst [vmem:[%s335 + $0x40] sm:$0xff] 0.0
        %352 = vst [vmem:[%s335 + $0x48] sm:$0xff] 0.0
        %353 = vst [vmem:[%s335 + $0x50] sm:$0xff] 0.0
        %354 = vst [vmem:[%s335 + $0x58] sm:$0xff] 0.0
        %355 = vst [vmem:[%s335 + $0x60] sm:$0xff] 0.0
        %356 = vst [vmem:[%s335 + $0x68] sm:$0xff] 0.0
        %357 = vst [vmem:[%s335 + $0x70] sm:$0xff] 0.0
        %358 = vst [vmem:[%s335 + $0x78] sm:$0xff] 0.0
      $region36: #{bigcn_forward.3} parent=31 // pred_fallthru
        _
      %s359 = sld [smem:[#allocation4 + %s338]]
      %p360 = scmp.lt.s32.totalorder %s33, %s359
      // Predicated region
      $region37: #{bigcn_forward.3} parent=31 // pred_check
        %p361 = pneg %p360
      $region38: #{bigcn_forward.3} parent=31 // pred_check_branch
        %363 = sbr.rel (%p361) target = $region40
      $region39: #{bigcn_forward.3} parent=31 // pred_region
        %s364 = sshra.s32 %s33, 7
        %s365 = sand.u32 %s33, 127
        %s366 = sadd.s32 %s364, %s338
        %s367 = smul.u32 %s366, 128
        %s368 = sshra.s32 %s33, 7
        %s369 = sand.u32 %s33, 127
        %s370 = sadd.s32 %s367, %s369
        %s371 = sld [smem:[#allocation3 + %s370]]
        %s372 = smul.u32 %s371, 128
        %s373 = sshra.s32 %s372, 3
        %s374 = sand.u32 %s372, 7
        %s375 = smul.addr %s373, 4
        %s376 = scalar_lea.vmem %s323, %s375
        %v377 = vld [vmem:[%s376] sm:$0xf]
        %v378 = vld [vmem:[%s376 + $0x4] sm:$0xf]
        %v379 = vld [vmem:[%s376 + $0x8] sm:$0xf]
        %v380 = vld [vmem:[%s376 + $0xc] sm:$0xf]
        %v381 = vld [vmem:[%s376 + $0x10] sm:$0xf]
        %v382 = vld [vmem:[%s376 + $0x14] sm:$0xf]
        %v383 = vld [vmem:[%s376 + $0x18] sm:$0xf]
        %v384 = vld [vmem:[%s376 + $0x1c] sm:$0xf]
        %v385 = vld [vmem:[%s376 + $0x20] sm:$0xf]
        %v386 = vld [vmem:[%s376 + $0x24] sm:$0xf]
        %v387 = vld [vmem:[%s376 + $0x28] sm:$0xf]
        %v388 = vld [vmem:[%s376 + $0x2c] sm:$0xf]
        %v389 = vld [vmem:[%s376 + $0x30] sm:$0xf]
        %v390 = vld [vmem:[%s376 + $0x34] sm:$0xf]
        %v391 = vld [vmem:[%s376 + $0x38] sm:$0xf]
        %v392 = vld [vmem:[%s376 + $0x3c] sm:$0xf]
        %v393 = vld [vmem:[%s335] sm:$0xff]
        %v394 = vld [vmem:[%s335 + $0x8] sm:$0xff]
        %v395 = vld [vmem:[%s335 + $0x10] sm:$0xff]
        %v396 = vld [vmem:[%s335 + $0x18] sm:$0xff]
        %v397 = vld [vmem:[%s335 + $0x20] sm:$0xff]
        %v398 = vld [vmem:[%s335 + $0x28] sm:$0xff]
        %v399 = vld [vmem:[%s335 + $0x30] sm:$0xff]
        %v400 = vld [vmem:[%s335 + $0x38] sm:$0xff]
        %v401 = vld [vmem:[%s335 + $0x40] sm:$0xff]
        %v402 = vld [vmem:[%s335 + $0x48] sm:$0xff]
        %v403 = vld [vmem:[%s335 + $0x50] sm:$0xff]
        %v404 = vld [vmem:[%s335 + $0x58] sm:$0xff]
        %v405 = vld [vmem:[%s335 + $0x60] sm:$0xff]
        %v406 = vld [vmem:[%s335 + $0x68] sm:$0xff]
        %v407 = vld [vmem:[%s335 + $0x70] sm:$0xff]
        %v408 = vld [vmem:[%s335 + $0x78] sm:$0xff]
        %v409 = vld [vmem:[%s308] sm:$0xf]
        %v410 = vld [vmem:[%s308 + $0x4] sm:$0xf]
        %v411 = vld [vmem:[%s308 + $0x8] sm:$0xf]
        %v412 = vld [vmem:[%s308 + $0xc] sm:$0xf]
        %v413 = vld [vmem:[%s308 + $0x10] sm:$0xf]
        %v414 = vld [vmem:[%s308 + $0x14] sm:$0xf]
        %v415 = vld [vmem:[%s308 + $0x18] sm:$0xf]
        %v416 = vld [vmem:[%s308 + $0x1c] sm:$0xf]
        %v417 = vld [vmem:[%s308 + $0x20] sm:$0xf]
        %v418 = vld [vmem:[%s308 + $0x24] sm:$0xf]
        %v419 = vld [vmem:[%s308 + $0x28] sm:$0xf]
        %v420 = vld [vmem:[%s308 + $0x2c] sm:$0xf]
        %v421 = vld [vmem:[%s308 + $0x30] sm:$0xf]
        %v422 = vld [vmem:[%s308 + $0x34] sm:$0xf]
        %v423 = vld [vmem:[%s308 + $0x38] sm:$0xf]
        %v424 = vld [vmem:[%s308 + $0x3c] sm:$0xf]
        %v441 = vunpack.c.l.b16 %v409
        %v442 = vunpack.c.l.b16 %v410
        %v443 = vunpack.c.l.b16 %v411
        %v444 = vunpack.c.l.b16 %v412
        %v445 = vunpack.c.l.b16 %v413
        %v446 = vunpack.c.l.b16 %v414
        %v447 = vunpack.c.l.b16 %v415
        %v448 = vunpack.c.l.b16 %v416
        %v449 = vunpack.c.l.b16 %v417
        %v450 = vunpack.c.l.b16 %v418
        %v451 = vunpack.c.l.b16 %v419
        %v452 = vunpack.c.l.b16 %v420
        %v453 = vunpack.c.l.b16 %v421
        %v454 = vunpack.c.l.b16 %v422
        %v455 = vunpack.c.l.b16 %v423
        %v456 = vunpack.c.l.b16 %v424
        %v457 = vpack.c.b16 %v442, %v441
        %v458 = vpack.c.b16 %v444, %v443
        %v459 = vpack.c.b16 %v446, %v445
        %v460 = vpack.c.b16 %v448, %v447
        %v461 = vpack.c.b16 %v450, %v449
        %v462 = vpack.c.b16 %v452, %v451
        %v463 = vpack.c.b16 %v454, %v453
        %v464 = vpack.c.b16 %v456, %v455
        %v489 = vunpack.c.l.b16 %v377
        %v490 = vunpack.c.l.b16 %v378
        %v491 = vunpack.c.l.b16 %v379
        %v492 = vunpack.c.l.b16 %v380
        %v493 = vunpack.c.l.b16 %v381
        %v494 = vunpack.c.l.b16 %v382
        %v495 = vunpack.c.l.b16 %v383
        %v496 = vunpack.c.l.b16 %v384
        %v497 = vunpack.c.l.b16 %v385
        %v498 = vunpack.c.l.b16 %v386
        %v499 = vunpack.c.l.b16 %v387
        %v500 = vunpack.c.l.b16 %v388
        %v501 = vunpack.c.l.b16 %v389
        %v502 = vunpack.c.l.b16 %v390
        %v503 = vunpack.c.l.b16 %v391
        %v504 = vunpack.c.l.b16 %v392
        %v505 = vpack.c.b16 %v490, %v489
        %v506 = vpack.c.b16 %v492, %v491
        %v507 = vpack.c.b16 %v494, %v493
        %v508 = vpack.c.b16 %v496, %v495
        %v509 = vpack.c.b16 %v498, %v497
        %v510 = vpack.c.b16 %v500, %v499
        %v511 = vpack.c.b16 %v502, %v501
        %v512 = vpack.c.b16 %v504, %v503
        %521 = vmatprep.subr.bf16.mxu0 0
        %522 = vmatpush1.bf16.msra.mxu0 %v512
        %523 = vmatprep.subr.bf16.mxu0 0
        %524 = vmatpush1.bf16.msra.mxu0 %v511
        %525 = vmatprep.subr.bf16.mxu0 0
        %526 = vmatpush1.bf16.msra.mxu0 %v510
        %527 = vmatprep.subr.bf16.mxu0 0
        %528 = vmatpush1.bf16.msra.mxu0 %v509
        %529 = vmatprep.subr.bf16.mxu0 0
        %530 = vmatpush1.bf16.msra.mxu0 %v508
        %531 = vmatprep.subr.bf16.mxu0 0
        %532 = vmatpush1.bf16.msra.mxu0 %v507
        %533 = vmatprep.subr.bf16.mxu0 0
        %534 = vmatpush1.bf16.msra.mxu0 %v506
        %535 = vmatprep.subr.bf16.mxu0 0
        %536 = vmatpush1.bf16.msra.mxu0 %v505
        %537 = vmatprep.subr.bf16.mxu0 0
        %538 = vmatpush2.bf16.msra.mxu0 0
        %539 = vmatprep.subr.bf16.mxu0 0
        %540 = vmatpush2.bf16.msra.mxu0 0
        %541 = vmatprep.subr.bf16.mxu0 0
        %542 = vmatpush2.bf16.msra.mxu0 0
        %543 = vmatprep.subr.bf16.mxu0 0
        %544 = vmatpush2.bf16.msra.mxu0 0
        %545 = vmatprep.subr.bf16.mxu0 0
        %546 = vmatpush2.bf16.msra.mxu0 0
        %547 = vmatprep.subr.bf16.mxu0 0
        %548 = vmatpush2.bf16.msra.mxu0 0
        %549 = vmatprep.subr.bf16.mxu0 0
        %550 = vmatpush2.bf16.msra.mxu0 0
        %551 = vmatprep.subr.bf16.mxu0 0
        %552 = vmatpush2.bf16.msra.mxu0 0
        %553 = vmatprep.mubr.bf16.mxu0 0
        %554 = vmatmul.mubr.bf16.gmra.mxu0 %v457
        %v555 = vpop.f32.mrf.mxu0
        %v556 = vadd.f32 0.0, %v555
        %v557 = vpop.f32.mrf.mxu0
        %v558 = vpop.f32.mrf.mxu0
        %v559 = vadd.f32 0.0, %v558
        %v560 = vpop.f32.mrf.mxu0
        %561 = vmatprep.mubr.bf16.mxu0 0
        %562 = vmatmul.mubr.bf16.gmra.mxu0 %v458
        %v563 = vpop.f32.mrf.mxu0
        %v564 = vadd.f32 0.0, %v563
        %v565 = vpop.f32.mrf.mxu0
        %v566 = vpop.f32.mrf.mxu0
        %v567 = vadd.f32 0.0, %v566
        %v568 = vpop.f32.mrf.mxu0
        %569 = vmatprep.mubr.bf16.mxu0 0
        %570 = vmatmul.mubr.bf16.gmra.mxu0 %v459
        %v571 = vpop.f32.mrf.mxu0
        %v572 = vadd.f32 0.0, %v571
        %v573 = vpop.f32.mrf.mxu0
        %v574 = vpop.f32.mrf.mxu0
        %v575 = vadd.f32 0.0, %v574
        %v576 = vpop.f32.mrf.mxu0
        %577 = vmatprep.mubr.bf16.mxu0 0
        %578 = vmatmul.mubr.bf16.gmra.mxu0 %v460
        %v579 = vpop.f32.mrf.mxu0
        %v580 = vadd.f32 0.0, %v579
        %v581 = vpop.f32.mrf.mxu0
        %v582 = vpop.f32.mrf.mxu0
        %v583 = vadd.f32 0.0, %v582
        %v584 = vpop.f32.mrf.mxu0
        %585 = vmatprep.mubr.bf16.mxu0 0
        %586 = vmatmul.mubr.bf16.gmra.mxu0 %v461
        %v587 = vpop.f32.mrf.mxu0
        %v588 = vadd.f32 0.0, %v587
        %v589 = vpop.f32.mrf.mxu0
        %v590 = vpop.f32.mrf.mxu0
        %v591 = vadd.f32 0.0, %v590
        %v592 = vpop.f32.mrf.mxu0
        %593 = vmatprep.mubr.bf16.mxu0 0
        %594 = vmatmul.mubr.bf16.gmra.mxu0 %v462
        %v595 = vpop.f32.mrf.mxu0
        %v596 = vadd.f32 0.0, %v595
        %v597 = vpop.f32.mrf.mxu0
        %v598 = vpop.f32.mrf.mxu0
        %v599 = vadd.f32 0.0, %v598
        %v600 = vpop.f32.mrf.mxu0
        %601 = vmatprep.mubr.bf16.mxu0 0
        %602 = vmatmul.mubr.bf16.gmra.mxu0 %v463
        %v603 = vpop.f32.mrf.mxu0
        %v604 = vadd.f32 0.0, %v603
        %v605 = vpop.f32.mrf.mxu0
        %v606 = vpop.f32.mrf.mxu0
        %v607 = vadd.f32 0.0, %v606
        %v608 = vpop.f32.mrf.mxu0
        %609 = vmatprep.mubr.bf16.mxu0 0
        %610 = vmatmul.mubr.bf16.gmra.mxu0 %v464
        %v611 = vpop.f32.mrf.mxu0
        %v612 = vadd.f32 0.0, %v611
        %v613 = vpop.f32.mrf.mxu0
        %v614 = vpop.f32.mrf.mxu0
        %v615 = vadd.f32 0.0, %v614
        %v616 = vpop.f32.mrf.mxu0
        %617 = vdwg.mxu0
        %v618 = vadd.f32 %v393, %v556
        %v619 = vadd.f32 %v394, %v559
        %v620 = vadd.f32 %v395, %v564
        %v621 = vadd.f32 %v396, %v567
        %v622 = vadd.f32 %v397, %v572
        %v623 = vadd.f32 %v398, %v575
        %v624 = vadd.f32 %v399, %v580
        %v625 = vadd.f32 %v400, %v583
        %v626 = vadd.f32 %v401, %v588
        %v627 = vadd.f32 %v402, %v591
        %v628 = vadd.f32 %v403, %v596
        %v629 = vadd.f32 %v404, %v599
        %v630 = vadd.f32 %v405, %v604
        %v631 = vadd.f32 %v406, %v607
        %v632 = vadd.f32 %v407, %v612
        %v633 = vadd.f32 %v408, %v615
        %634 = vst [vmem:[%s335] sm:$0xff] %v618
        %635 = vst [vmem:[%s335 + $0x8] sm:$0xff] %v619
        %636 = vst [vmem:[%s335 + $0x10] sm:$0xff] %v620
        %637 = vst [vmem:[%s335 + $0x18] sm:$0xff] %v621
        %638 = vst [vmem:[%s335 + $0x20] sm:$0xff] %v622
        %639 = vst [vmem:[%s335 + $0x28] sm:$0xff] %v623
        %640 = vst [vmem:[%s335 + $0x30] sm:$0xff] %v624
        %641 = vst [vmem:[%s335 + $0x38] sm:$0xff] %v625
        %642 = vst [vmem:[%s335 + $0x40] sm:$0xff] %v626
        %643 = vst [vmem:[%s335 + $0x48] sm:$0xff] %v627
        %644 = vst [vmem:[%s335 + $0x50] sm:$0xff] %v628
        %645 = vst [vmem:[%s335 + $0x58] sm:$0xff] %v629
        %646 = vst [vmem:[%s335 + $0x60] sm:$0xff] %v630
        %647 = vst [vmem:[%s335 + $0x68] sm:$0xff] %v631
        %648 = vst [vmem:[%s335 + $0x70] sm:$0xff] %v632
        %649 = vst [vmem:[%s335 + $0x78] sm:$0xff] %v633
      $region40: #{bigcn_forward.3} parent=31 // pred_fallthru
        _
      // Predicated region
      $region41: #{bigcn_forward.3} parent=31 // pred_check
        %p650 = pneg %p339
      $region42: #{bigcn_forward.3} parent=31 // pred_check_branch
        %652 = sbr.rel (%p650) target = $region44
      $region43: #{bigcn_forward.3} parent=31 // pred_region
        %v653 = vld [vmem:[%s335] sm:$0xff]
        %v654 = vld [vmem:[%s335 + $0x8] sm:$0xff]
        %v655 = vld [vmem:[%s335 + $0x10] sm:$0xff]
        %v656 = vld [vmem:[%s335 + $0x18] sm:$0xff]
        %v657 = vld [vmem:[%s335 + $0x20] sm:$0xff]
        %v658 = vld [vmem:[%s335 + $0x28] sm:$0xff]
        %v659 = vld [vmem:[%s335 + $0x30] sm:$0xff]
        %v660 = vld [vmem:[%s335 + $0x38] sm:$0xff]
        %v661 = vld [vmem:[%s335 + $0x40] sm:$0xff]
        %v662 = vld [vmem:[%s335 + $0x48] sm:$0xff]
        %v663 = vld [vmem:[%s335 + $0x50] sm:$0xff]
        %v664 = vld [vmem:[%s335 + $0x58] sm:$0xff]
        %v665 = vld [vmem:[%s335 + $0x60] sm:$0xff]
        %v666 = vld [vmem:[%s335 + $0x68] sm:$0xff]
        %v667 = vld [vmem:[%s335 + $0x70] sm:$0xff]
        %v668 = vld [vmem:[%s335 + $0x78] sm:$0xff]
        %v669 = vld [vmem:[%s326] sm:$0x1]
        %v671 = vlaneseq
        %v672 = vshrl.u32 %v671, 7
        %v673 = vsub.s32 0, %v672
        %v674 = vrot.slane %v669, %v673
        %v676 = vadd.f32 %v653, %v674
        %v677 = vadd.f32 %v654, %v674
        %v678 = vadd.f32 %v655, %v674
        %v679 = vadd.f32 %v656, %v674
        %v680 = vadd.f32 %v657, %v674
        %v681 = vadd.f32 %v658, %v674
        %v682 = vadd.f32 %v659, %v674
        %v683 = vadd.f32 %v660, %v674
        %v684 = vadd.f32 %v661, %v674
        %v685 = vadd.f32 %v662, %v674
        %v686 = vadd.f32 %v663, %v674
        %v687 = vadd.f32 %v664, %v674
        %v688 = vadd.f32 %v665, %v674
        %v689 = vadd.f32 %v666, %v674
        %v690 = vadd.f32 %v667, %v674
        %v691 = vadd.f32 %v668, %v674
        %v692 = vmax.f32 %v676, 0.0
        %v693 = vmax.f32 %v677, 0.0
        %v694 = vmax.f32 %v678, 0.0
        %v695 = vmax.f32 %v679, 0.0
        %v696 = vmax.f32 %v680, 0.0
        %v697 = vmax.f32 %v681, 0.0
        %v698 = vmax.f32 %v682, 0.0
        %v699 = vmax.f32 %v683, 0.0
        %v700 = vmax.f32 %v684, 0.0
        %v701 = vmax.f32 %v685, 0.0
        %v702 = vmax.f32 %v686, 0.0
        %v703 = vmax.f32 %v687, 0.0
        %v704 = vmax.f32 %v688, 0.0
        %v705 = vmax.f32 %v689, 0.0
        %v706 = vmax.f32 %v690, 0.0
        %v707 = vmax.f32 %v691, 0.0
        %708 = vst [vmem:[%s335] sm:$0xff] %v692
        %709 = vst [vmem:[%s335 + $0x8] sm:$0xff] %v693
        %710 = vst [vmem:[%s335 + $0x10] sm:$0xff] %v694
        %711 = vst [vmem:[%s335 + $0x18] sm:$0xff] %v695
        %712 = vst [vmem:[%s335 + $0x20] sm:$0xff] %v696
        %713 = vst [vmem:[%s335 + $0x28] sm:$0xff] %v697
        %714 = vst [vmem:[%s335 + $0x30] sm:$0xff] %v698
        %715 = vst [vmem:[%s335 + $0x38] sm:$0xff] %v699
        %716 = vst [vmem:[%s335 + $0x40] sm:$0xff] %v700
        %717 = vst [vmem:[%s335 + $0x48] sm:$0xff] %v701
        %718 = vst [vmem:[%s335 + $0x50] sm:$0xff] %v702
        %719 = vst [vmem:[%s335 + $0x58] sm:$0xff] %v703
        %720 = vst [vmem:[%s335 + $0x60] sm:$0xff] %v704
        %721 = vst [vmem:[%s335 + $0x68] sm:$0xff] %v705
        %722 = vst [vmem:[%s335 + $0x70] sm:$0xff] %v706
        %723 = vst [vmem:[%s335 + $0x78] sm:$0xff] %v707
      $region44: #{bigcn_forward.3} parent=31 // pred_fallthru
        _
      %s724 = smul.u32 16, %s32
      %p725 = scmp.lt.s32.totalorder %s31, 1
      %s726 = scalar_select %p725, %s31, 1
      %p727 = scmp.lt.s32.totalorder %s724, 15
      %s728 = scalar_select %p727, %s724, 15
      %s729 = smul.addr %s726, 16
      %s730 = sadd.s32 %s728, %s729
      %s731 = smul.addr %s730, 8
      %s732 = scalar_lea.vmem %s5, %s731
      // Predicated region
      $region45: #{bigcn_forward.3} parent=31 // pred_check
        %p733 = pneg %p165
      $region46: #{bigcn_forward.3} parent=31 // pred_check_branch
        %735 = sbr.rel (%p733) target = $region48
      $region47: #{bigcn_forward.3} parent=31 // pred_region
        %s736 = smul.u32 16, %s32
      $region48: #{bigcn_forward.3} parent=31 // pred_fallthru
        _
    $region32: #{bigcn_forward.3} parent=5 // pred_fallthru
      _
    %p737 = scmp.le.s32.totalorder 2, %s21
    // Predicated region
    $region49: #{bigcn_forward.3} parent=5 // pred_check
      %p738 = pneg %p737
    $region50: #{bigcn_forward.3} parent=5 // pred_check_branch
      %740 = sbr.rel (%p738) target = $region52
    $region51: #{bigcn_forward.3} parent=5 // pred_region
      %s741 = ssub.s32 %s21, 2
      // Predicated region
      $region53: #{bigcn_forward.3} parent=51 // pred_check
        %p742 = pneg %p171
      $region54: #{bigcn_forward.3} parent=51 // pred_check_branch
        %744 = sbr.rel (%p742) target = $region56
      $region55: #{bigcn_forward.3} parent=51 // pred_region
        %s745 = smul.u32 16, %s35
        %p746 = scmp.lt.s32.totalorder %s34, 1
        %s747 = scalar_select %p746, %s34, 1
        %p748 = scmp.lt.s32.totalorder %s745, 15
        %s749 = scalar_select %p748, %s745, 15
        %s750 = smul.addr %s747, 16
        %s751 = sadd.s32 %s749, %s750
        %s752 = smul.addr %s751, 8
        %s753 = scalar_lea.vmem %s5, %s752
      $region56: #{bigcn_forward.3} parent=51 // pred_fallthru
        _
    $region52: #{bigcn_forward.3} parent=5 // pred_fallthru
      _
  $region6: #{bigcn_forward.3} parent=0 // loop_footer
    %s25 = sadd.s32 1, %s21
  $region7: #{bigcn_forward.3} parent=0 // loop_footer_branch
    %20 = sbr.rel target = $region3
  $region8: #{bigcn_forward.3} parent=0 // loop_exit
    _

</llo_original>
